<compile_context>
chip_gen: v7x
topology: tpu7x:2x2x1
jax: 0.10.0
libtpu: 0.0.40
codegen_flags: <defaults>
</compile_context>

<pallas_src>
import jax
import jax.numpy as jnp
from jax.experimental import pallas as pl
from jax.experimental.pallas import tpu as pltpu

PARAM_NAMES = (
    "w1", "b1", "w2", "b2", "w3", "b3",
    "cb1_w", "cb1_b", "cb2_w", "cb2_b",
    "r1_w", "r1_b", "r2_w", "r2_b",
    "c2_w", "c2_b", "c3_w", "c3_b",
)

_BN_EPS = 1e-5


def _elu(x):
    return jnp.where(x > 0, x, jnp.exp(jnp.minimum(x, 0.0)) - 1.0)


def _conv_same(x, w2d, b, tb):
    """'Same' 1-D conv (stride 1) on the length-major / batch-minor layout.

    x:   (Cin, L*tb)   lane index = l*tb + b
    w2d: (Cout, K*Cin) column index = k*Cin + ci  (tap k corresponds to offset k - pad)
    b:   (Cout, 1)
    """
    cin, n = x.shape
    ksize = w2d.shape[1] // cin
    pad = (ksize - 1) // 2
    parts = []
    for k in range(ksize):
        s = (k - pad) * tb                     # lane shift, in whole tb-blocks
        if s == 0:
            parts.append(x)
        elif s >= n or -s >= n:
            parts.append(jnp.zeros_like(x))
        elif s > 0:
            parts.append(jnp.concatenate(
                [x[:, s:], jnp.zeros((cin, s), x.dtype)], axis=1))
        else:
            parts.append(jnp.concatenate(
                [jnp.zeros((cin, -s), x.dtype), x[:, :n + s]], axis=1))
    stacked = jnp.concatenate(parts, axis=0)   # (K*Cin, L*tb), one MXU push per conv
    return jnp.dot(w2d, stacked, preferred_element_type=jnp.float32) + b


def _upsample2(x, tb):
    """Nearest x2 upsample along length for the (C, L*tb) length-major layout."""
    _, n = x.shape
    length = n // tb
    parts = []
    for l in range(length):
        blk = x[:, l * tb:(l + 1) * tb]
        parts.append(blk)
        parts.append(blk)
    return jnp.concatenate(parts, axis=1)      # (C, 2*L*tb)


def _decoder_kernel(z_ref, *rest):
    param_refs = rest[:-1]
    o_ref = rest[-1]
    p = {name: r[...] for name, r in zip(PARAM_NAMES, param_refs)}
    tb = z_ref.shape[1]

    # ---- decoder1: Linear/ELU/Dropout x2 + Linear  (features x batch layout) ----
    h = _elu(jnp.dot(p["w1"], z_ref[...], preferred_element_type=jnp.float32) + p["b1"])
    h = _elu(jnp.dot(p["w2"], h, preferred_element_type=jnp.float32) + p["b2"])
    y = jnp.dot(p["w3"], h, preferred_element_type=jnp.float32) + p["b3"]   # (8*L0, tb)

    # Unflatten(1, (8, L0)) + relayout to (channels, length*batch).  w3 rows were
    # permuted host-side to (l*8 + c) order so each length position is one aligned
    # 8-row (single f32 sublane tile) slice.
    l0 = y.shape[0] // 8
    x = jnp.concatenate([y[8 * l:8 * (l + 1), :] for l in range(l0)], axis=1)  # (8, L0*tb)

    # ---- decoder2 ----
    x = _elu(_conv_same(x, p["cb1_w"], p["cb1_b"], tb))     # ConvBlock(8->16)  (BN folded)
    x = _upsample2(x, tb)                                   # nearest x2
    x = _elu(_conv_same(x, p["cb2_w"], p["cb2_b"], tb))     # ConvBlock(16->16) (BN folded)
    x = _upsample2(x, tb)                                   # nearest x2 -> (16, out_dim*tb)
    r = _elu(_conv_same(x, p["r1_w"], p["r1_b"], tb))       # ResidualBlock (see TODO above)
    r = _conv_same(r, p["r2_w"], p["r2_b"], tb)
    x = _elu(x + r)
    x = _elu(_conv_same(x, p["c2_w"], p["c2_b"], tb))       # Conv1d(16,16,5,pad=2) + ELU

    # ---- decoder3: BatchNorm1d(16) + Conv1d(16, out_channel, 1), folded to one matmul ----
    o_ref[...] = (jnp.dot(p["c3_w"], x, preferred_element_type=jnp.float32)
                  + p["c3_b"]).astype(o_ref.dtype)


def _pick_tile_b(batch, out_dim):
    # Keep the (K*Cin, out_dim*tile_b) stacked conv operand comfortably inside VMEM.
    cap = max(8, 32768 // max(out_dim, 1))
    return int(min(128, cap, max(batch, 1)))


def conv_decoder_forward(z, params, out_dim, *, tile_b=None):
    batch, latent_dim = z.shape
    out_channel = params["c3_w"].shape[0]
    tb = _pick_tile_b(batch, out_dim) if tile_b is None else int(min(tile_b, batch))
    num_tiles = -(-batch // tb)
    bpad = num_tiles * tb
    n_lanes = out_dim * tb

    # Host-side layout plumbing (cheap XLA): pad batch, transpose to (latent, batch-tile).
    z_pad = jnp.zeros((bpad, latent_dim), z.dtype).at[:batch].set(z)
    z3d = z_pad.reshape(num_tiles, tb, latent_dim).transpose(0, 2, 1)   # (tiles, latent, tb)

    in_specs = [pl.BlockSpec((None, latent_dim, tb), lambda i: (i, 0, 0))]
    args = [z3d]
    for name in PARAM_NAMES:
        v = params[name]
        in_specs.append(pl.BlockSpec(v.shape, (lambda i, _nd=v.ndim: (0,) * _nd)))
        args.append(v)

    out = pl.pallas_call(
        _decoder_kernel,
        out_shape=jax.ShapeDtypeStruct((num_tiles, out_channel, n_lanes), jnp.float32),
        grid=(num_tiles,),
        in_specs=in_specs,
        out_specs=pl.BlockSpec((None, out_channel, n_lanes), lambda i: (i, 0, 0)),
        compiler_params=pltpu.CompilerParams(dimension_semantics=("parallel",)),
    )(*args)

    # (tiles, out_channel, out_dim*tb) lane index l*tb + b  ->  (batch, out_channel, out_dim)
    out = out.reshape(num_tiles, out_channel, out_dim, tb)
    out = out.transpose(0, 3, 1, 2).reshape(bpad, out_channel, out_dim)
    return out[:batch]


# ----------------------------- host-side parameter prep -----------------------------

def _fold_bn(conv_w, conv_b, gamma, beta, mean, var, eps=_BN_EPS):
    s = gamma / jnp.sqrt(var + eps)
    return conv_w * s[:, None, None], conv_b * s + (beta - mean * s)


def _conv_w_to_2d(w):
    # (Cout, Cin, K) -> (Cout, K*Cin) with column index k*Cin + ci (matches in-kernel stack)
    return jnp.transpose(w, (0, 2, 1)).reshape(w.shape[0], -1)


def prepare_params(rp, out_dim):
    l0 = out_dim // 4
    p = {}
    p["w1"] = rp["lin1_w"]
    p["b1"] = rp["lin1_b"][:, None]
    p["w2"] = rp["lin2_w"]
    p["b2"] = rp["lin2_b"][:, None]

    # Permute lin3 rows from f = c*L0 + l (PyTorch Unflatten order) to f' = l*8 + c so
    # the kernel can peel sublane-aligned 8-row blocks per length position.
    fprime = jnp.arange(8 * l0)
    src = (fprime % 8) * l0 + fprime // 8
    p["w3"] = rp["lin3_w"][src, :]
    p["b3"] = rp["lin3_b"][src][:, None]

    w, b = _fold_bn(rp["cb1_w"], rp["cb1_b"], rp["cb1_g"], rp["cb1_be"], rp["cb1_m"], rp["cb1_v"])
    p["cb1_w"], p["cb1_b"] = _conv_w_to_2d(w), b[:, None]
    w, b = _fold_bn(rp["cb2_w"], rp["cb2_b"], rp["cb2_g"], rp["cb2_be"], rp["cb2_m"], rp["cb2_v"])
    p["cb2_w"], p["cb2_b"] = _conv_w_to_2d(w), b[:, None]

    p["r1_w"], p["r1_b"] = _conv_w_to_2d(rp["r1_w"]), rp["r1_b"][:, None]
    p["r2_w"], p["r2_b"] = _conv_w_to_2d(rp["r2_w"]), rp["r2_b"][:, None]
    p["c2_w"], p["c2_b"] = _conv_w_to_2d(rp["c2_w"]), rp["c2_b"][:, None]

    # decoder3: BatchNorm1d(16) folded into the 1x1 conv.
    s3 = rp["bn3_g"] / jnp.sqrt(rp["bn3_v"] + _BN_EPS)
    t3 = rp["bn3_be"] - rp["bn3_m"] * s3
    c3w0 = rp["c3_w"][:, :, 0]                               # (out_channel, 16)
    p["c3_w"] = c3w0 * s3[None, :]
    p["c3_b"] = (c3w0 @ t3 + rp["c3_b"])[:, None]
    return p


def init_params(key, latent_dim, out_channel, out_dim, hidden_dim):
    keys = iter(jax.random.split(key, 48))

    def nrm(shape, scale):
        return (scale * jax.random.normal(next(keys), shape)).astype(jnp.float32)

    def bn(c):
        return (1.0 + nrm((c,), 0.1), nrm((c,), 0.1), nrm((c,), 0.2),
                0.5 + jax.random.uniform(next(keys), (c,), dtype=jnp.float32))

    rp = {}
    rp["lin1_w"] = nrm((hidden_dim, latent_dim), 0.25); rp["lin1_b"] = nrm((hidden_dim,), 0.05)
    rp["lin2_w"] = nrm((hidden_dim, hidden_dim), 0.2);  rp["lin2_b"] = nrm((hidden_dim,), 0.05)
    rp["lin3_w"] = nrm((2 * out_dim, hidden_dim), 0.2); rp["lin3_b"] = nrm((2 * out_dim,), 0.05)
    rp["cb1_w"] = nrm((16, 8, 5), 0.15);  rp["cb1_b"] = nrm((16,), 0.05)
    rp["cb1_g"], rp["cb1_be"], rp["cb1_m"], rp["cb1_v"] = bn(16)
    rp["cb2_w"] = nrm((16, 16, 5), 0.12); rp["cb2_b"] = nrm((16,), 0.05)
    rp["cb2_g"], rp["cb2_be"], rp["cb2_m"], rp["cb2_v"] = bn(16)
    rp["r1_w"] = nrm((16, 16, 5), 0.12);  rp["r1_b"] = nrm((16,), 0.05)
    rp["r2_w"] = nrm((16, 16, 5), 0.12);  rp["r2_b"] = nrm((16,), 0.05)
    rp["c2_w"] = nrm((16, 16, 5), 0.12);  rp["c2_b"] = nrm((16,), 0.05)
    rp["bn3_g"], rp["bn3_be"], rp["bn3_m"], rp["bn3_v"] = bn(16)
    rp["c3_w"] = nrm((out_channel, 16, 1), 0.2); rp["c3_b"] = nrm((out_channel,), 0.05)
    return rp


# ----------------------------- pure-JAX reference (no Pallas) -----------------------------

def reference_forward(z, rp, out_dim):
    hp = jax.lax.Precision.HIGHEST

    def elu(x):
        return jnp.where(x > 0, x, jnp.exp(jnp.minimum(x, 0.0)) - 1.0)

    def conv(x, w, b, pad):
        y = jax.lax.conv_general_dilated(
            x, w, window_strides=(1,), padding=[(pad, pad)],
            dimension_numbers=("NCH", "OIH", "NCH"), precision=hp)
        return y + b[None, :, None]

    def bn(x, g, be, m, v):
        s = g / jnp.sqrt(v + _BN_EPS)
        return x * s[None, :, None] + (be - m * s)[None, :, None]

    h = elu(jnp.dot(z, rp["lin1_w"].T, precision=hp) + rp["lin1_b"])            # Dropout = id
    h = elu(jnp.dot(h, rp["lin2_w"].T, precision=hp) + rp["lin2_b"])
    h = jnp.dot(h, rp["lin3_w"].T, precision=hp) + rp["lin3_b"]
    x = h.reshape(z.shape[0], 8, out_dim // 4)                                  # Unflatten
    x = elu(bn(conv(x, rp["cb1_w"], rp["cb1_b"], 2),
               rp["cb1_g"], rp["cb1_be"], rp["cb1_m"], rp["cb1_v"]))
    x = jnp.repeat(x, 2, axis=2)
    x = elu(bn(conv(x, rp["cb2_w"], rp["cb2_b"], 2),
               rp["cb2_g"], rp["cb2_be"], rp["cb2_m"], rp["cb2_v"]))
    x = jnp.repeat(x, 2, axis=2)
    r = elu(conv(x, rp["r1_w"], rp["r1_b"], 2))                                 # ResidualBlock (assumed)
    r = conv(r, rp["r2_w"], rp["r2_b"], 2)
    x = elu(x + r)
    x = elu(conv(x, rp["c2_w"], rp["c2_b"], 2))
    x = bn(x, rp["bn3_g"], rp["bn3_be"], rp["bn3_m"], rp["bn3_v"])
    return conv(x, rp["c3_w"], rp["c3_b"], 0)


if __name__ == "__main__":
    batch, latent_dim, out_channel, out_dim, hidden_dim = 6, 16, 4, 16, 32
    key = jax.random.PRNGKey(0)
    zkey, pkey = jax.random.split(key)
    z = jax.random.normal(zkey, (batch, latent_dim), dtype=jnp.float32)

    raw = init_params(pkey, latent_dim, out_channel, out_dim, hidden_dim)
    kparams = prepare_params(raw, out_dim)

    # tile_b=4 exercises a multi-step "parallel" grid plus the batch-padding path.
    out = conv_decoder_forward(z, kparams, out_dim, tile_b=4)
    out = jax.block_until_ready(out)
    assert out.shape == (batch, out_channel, out_dim), out.shape

    ref = reference_forward(z, raw, out_dim)
    max_err = float(jnp.max(jnp.abs(out - ref)))
    scale = float(jnp.max(jnp.abs(ref)))
    assert max_err <= 5e-3 * max(1.0, scale), f"mismatch vs reference: {max_err} (scale {scale})"

    print("KERNEL_OK")
</pallas_src>

<mosaic_0001>
module attributes {stable_mosaic.version = 11 : i64} {
  func.func @_decoder_kernel(%arg0: i32, %arg1: memref<1x16x4xf32, #tpu.memory_space<vmem>>, %arg2: memref<32x16xf32, #tpu.memory_space<vmem>>, %arg3: memref<32x1xf32, #tpu.memory_space<vmem>>, %arg4: memref<32x32xf32, #tpu.memory_space<vmem>>, %arg5: memref<32x1xf32, #tpu.memory_space<vmem>>, %arg6: memref<32x32xf32, #tpu.memory_space<vmem>>, %arg7: memref<32x1xf32, #tpu.memory_space<vmem>>, %arg8: memref<16x40xf32, #tpu.memory_space<vmem>>, %arg9: memref<16x1xf32, #tpu.memory_space<vmem>>, %arg10: memref<16x80xf32, #tpu.memory_space<vmem>>, %arg11: memref<16x1xf32, #tpu.memory_space<vmem>>, %arg12: memref<16x80xf32, #tpu.memory_space<vmem>>, %arg13: memref<16x1xf32, #tpu.memory_space<vmem>>, %arg14: memref<16x80xf32, #tpu.memory_space<vmem>>, %arg15: memref<16x1xf32, #tpu.memory_space<vmem>>, %arg16: memref<16x80xf32, #tpu.memory_space<vmem>>, %arg17: memref<16x1xf32, #tpu.memory_space<vmem>>, %arg18: memref<4x16xf32, #tpu.memory_space<vmem>>, %arg19: memref<4x1xf32, #tpu.memory_space<vmem>>, %arg20: memref<1x4x64xf32, #tpu.memory_space<vmem>>) attributes {dimension_semantics = [#tpu.dimension_semantics<parallel>], iteration_bounds = array<i64: 2>, scalar_prefetch = 0 : i64, scratch_operands = 0 : i64, tpu.core_type = #tpu.core_type<tc>, window_params = [{transform_indices = @transform_0, window_bounds = array<i64: 1, 16, 4>}, {pipeline_mode = #tpu.pipeline_mode<synchronous>, transform_indices = @transform_1, window_bounds = array<i64: 32, 16>}, {pipeline_mode = #tpu.pipeline_mode<synchronous>, transform_indices = @transform_2, window_bounds = array<i64: 32, 1>}, {pipeline_mode = #tpu.pipeline_mode<synchronous>, transform_indices = @transform_3, window_bounds = array<i64: 32, 32>}, {pipeline_mode = #tpu.pipeline_mode<synchronous>, transform_indices = @transform_4, window_bounds = array<i64: 32, 1>}, {pipeline_mode = #tpu.pipeline_mode<synchronous>, transform_indices = @transform_5, window_bounds = array<i64: 32, 32>}, {pipeline_mode = #tpu.pipeline_mode<synchronous>, transform_indices = @transform_6, window_bounds = array<i64: 32, 1>}, {pipeline_mode = #tpu.pipeline_mode<synchronous>, transform_indices = @transform_7, window_bounds = array<i64: 16, 40>}, {pipeline_mode = #tpu.pipeline_mode<synchronous>, transform_indices = @transform_8, window_bounds = array<i64: 16, 1>}, {pipeline_mode = #tpu.pipeline_mode<synchronous>, transform_indices = @transform_9, window_bounds = array<i64: 16, 80>}, {pipeline_mode = #tpu.pipeline_mode<synchronous>, transform_indices = @transform_10, window_bounds = array<i64: 16, 1>}, {pipeline_mode = #tpu.pipeline_mode<synchronous>, transform_indices = @transform_11, window_bounds = array<i64: 16, 80>}, {pipeline_mode = #tpu.pipeline_mode<synchronous>, transform_indices = @transform_12, window_bounds = array<i64: 16, 1>}, {pipeline_mode = #tpu.pipeline_mode<synchronous>, transform_indices = @transform_13, window_bounds = array<i64: 16, 80>}, {pipeline_mode = #tpu.pipeline_mode<synchronous>, transform_indices = @transform_14, window_bounds = array<i64: 16, 1>}, {pipeline_mode = #tpu.pipeline_mode<synchronous>, transform_indices = @transform_15, window_bounds = array<i64: 16, 80>}, {pipeline_mode = #tpu.pipeline_mode<synchronous>, transform_indices = @transform_16, window_bounds = array<i64: 16, 1>}, {pipeline_mode = #tpu.pipeline_mode<synchronous>, transform_indices = @transform_17, window_bounds = array<i64: 4, 16>}, {pipeline_mode = #tpu.pipeline_mode<synchronous>, transform_indices = @transform_18, window_bounds = array<i64: 4, 1>}, {transform_indices = @transform_19, window_bounds = array<i64: 1, 4, 64>}]} {
    %c0 = arith.constant 0 : index
    %c0_0 = arith.constant 0 : index
    %0 = vector.load %arg2[%c0, %c0_0] : memref<32x16xf32, #tpu.memory_space<vmem>>, vector<32x16xf32>
    %c0_1 = arith.constant 0 : index
    %c0_2 = arith.constant 0 : index
    %1 = vector.load %arg3[%c0_1, %c0_2] : memref<32x1xf32, #tpu.memory_space<vmem>>, vector<32x1xf32>
    %c0_3 = arith.constant 0 : index
    %c0_4 = arith.constant 0 : index
    %2 = vector.load %arg4[%c0_3, %c0_4] : memref<32x32xf32, #tpu.memory_space<vmem>>, vector<32x32xf32>
    %c0_5 = arith.constant 0 : index
    %c0_6 = arith.constant 0 : index
    %3 = vector.load %arg5[%c0_5, %c0_6] : memref<32x1xf32, #tpu.memory_space<vmem>>, vector<32x1xf32>
    %c0_7 = arith.constant 0 : index
    %c0_8 = arith.constant 0 : index
    %4 = vector.load %arg6[%c0_7, %c0_8] : memref<32x32xf32, #tpu.memory_space<vmem>>, vector<32x32xf32>
    %c0_9 = arith.constant 0 : index
    %c0_10 = arith.constant 0 : index
    %5 = vector.load %arg7[%c0_9, %c0_10] : memref<32x1xf32, #tpu.memory_space<vmem>>, vector<32x1xf32>
    %c0_11 = arith.constant 0 : index
    %c0_12 = arith.constant 0 : index
    %6 = vector.load %arg8[%c0_11, %c0_12] : memref<16x40xf32, #tpu.memory_space<vmem>>, vector<16x40xf32>
    %c0_13 = arith.constant 0 : index
    %c0_14 = arith.constant 0 : index
    %7 = vector.load %arg9[%c0_13, %c0_14] : memref<16x1xf32, #tpu.memory_space<vmem>>, vector<16x1xf32>
    %c0_15 = arith.constant 0 : index
    %c0_16 = arith.constant 0 : index
    %8 = vector.load %arg10[%c0_15, %c0_16] : memref<16x80xf32, #tpu.memory_space<vmem>>, vector<16x80xf32>
    %c0_17 = arith.constant 0 : index
    %c0_18 = arith.constant 0 : index
    %9 = vector.load %arg11[%c0_17, %c0_18] : memref<16x1xf32, #tpu.memory_space<vmem>>, vector<16x1xf32>
    %c0_19 = arith.constant 0 : index
    %c0_20 = arith.constant 0 : index
    %10 = vector.load %arg12[%c0_19, %c0_20] : memref<16x80xf32, #tpu.memory_space<vmem>>, vector<16x80xf32>
    %c0_21 = arith.constant 0 : index
    %c0_22 = arith.constant 0 : index
    %11 = vector.load %arg13[%c0_21, %c0_22] : memref<16x1xf32, #tpu.memory_space<vmem>>, vector<16x1xf32>
    %c0_23 = arith.constant 0 : index
    %c0_24 = arith.constant 0 : index
    %12 = vector.load %arg14[%c0_23, %c0_24] : memref<16x80xf32, #tpu.memory_space<vmem>>, vector<16x80xf32>
    %c0_25 = arith.constant 0 : index
    %c0_26 = arith.constant 0 : index
    %13 = vector.load %arg15[%c0_25, %c0_26] : memref<16x1xf32, #tpu.memory_space<vmem>>, vector<16x1xf32>
    %c0_27 = arith.constant 0 : index
    %c0_28 = arith.constant 0 : index
    %14 = vector.load %arg16[%c0_27, %c0_28] : memref<16x80xf32, #tpu.memory_space<vmem>>, vector<16x80xf32>
    %c0_29 = arith.constant 0 : index
    %c0_30 = arith.constant 0 : index
    %15 = vector.load %arg17[%c0_29, %c0_30] : memref<16x1xf32, #tpu.memory_space<vmem>>, vector<16x1xf32>
    %c0_31 = arith.constant 0 : index
    %c0_32 = arith.constant 0 : index
    %16 = vector.load %arg18[%c0_31, %c0_32] : memref<4x16xf32, #tpu.memory_space<vmem>>, vector<4x16xf32>
    %c0_33 = arith.constant 0 : index
    %c0_34 = arith.constant 0 : index
    %17 = vector.load %arg19[%c0_33, %c0_34] : memref<4x1xf32, #tpu.memory_space<vmem>>, vector<4x1xf32>
    %c0_35 = arith.constant 0 : index
    %c0_36 = arith.constant 0 : index
    %c0_37 = arith.constant 0 : index
    %18 = vector.load %arg1[%c0_35, %c0_36, %c0_37] : memref<1x16x4xf32, #tpu.memory_space<vmem>>, vector<1x16x4xf32>
    %19 = vector.shape_cast %18 : vector<1x16x4xf32> to vector<16x4xf32>
    %cst = arith.constant dense<0.000000e+00> : vector<32x4xf32>
    %20 = tpu.matmul %0, %19, %cst {dimension_numbers = #tpu.dot_dimension_numbers<[1], [0], [0], [1], [0, 0, 1, 1], [], []>} : vector<32x16xf32>, vector<16x4xf32>, vector<32x4xf32> -> vector<32x4xf32>
    %21 = vector.broadcast %1 : vector<32x1xf32> to vector<32x4xf32>
    %22 = arith.addf %20, %21 : vector<32x4xf32>
    %cst_38 = arith.constant 0.000000e+00 : f32
    %23 = vector.broadcast %cst_38 : f32 to vector<32x4xf32>
    %24 = arith.cmpf ogt, %22, %23 : vector<32x4xf32>
    %cst_39 = arith.constant 0.000000e+00 : f32
    %25 = vector.broadcast %cst_39 : f32 to vector<32x4xf32>
    %26 = arith.minimumf %22, %25 : vector<32x4xf32>
    %27 = math.exp %26 : vector<32x4xf32>
    %cst_40 = arith.constant 1.000000e+00 : f32
    %28 = vector.broadcast %cst_40 : f32 to vector<32x4xf32>
    %29 = arith.subf %27, %28 : vector<32x4xf32>
    %30 = arith.select %24, %22, %29 : vector<32x4xi1>, vector<32x4xf32>
    %cst_41 = arith.constant dense<0.000000e+00> : vector<32x4xf32>
    %31 = tpu.matmul %2, %30, %cst_41 {dimension_numbers = #tpu.dot_dimension_numbers<[1], [0], [0], [1], [0, 0, 1, 1], [], []>} : vector<32x32xf32>, vector<32x4xf32>, vector<32x4xf32> -> vector<32x4xf32>
    %32 = vector.broadcast %3 : vector<32x1xf32> to vector<32x4xf32>
    %33 = arith.addf %31, %32 : vector<32x4xf32>
    %cst_42 = arith.constant 0.000000e+00 : f32
    %34 = vector.broadcast %cst_42 : f32 to vector<32x4xf32>
    %35 = arith.cmpf ogt, %33, %34 : vector<32x4xf32>
    %cst_43 = arith.constant 0.000000e+00 : f32
    %36 = vector.broadcast %cst_43 : f32 to vector<32x4xf32>
    %37 = arith.minimumf %33, %36 : vector<32x4xf32>
    %38 = math.exp %37 : vector<32x4xf32>
    %cst_44 = arith.constant 1.000000e+00 : f32
    %39 = vector.broadcast %cst_44 : f32 to vector<32x4xf32>
    %40 = arith.subf %38, %39 : vector<32x4xf32>
    %41 = arith.select %35, %33, %40 : vector<32x4xi1>, vector<32x4xf32>
    %cst_45 = arith.constant dense<0.000000e+00> : vector<32x4xf32>
    %42 = tpu.matmul %4, %41, %cst_45 {dimension_numbers = #tpu.dot_dimension_numbers<[1], [0], [0], [1], [0, 0, 1, 1], [], []>} : vector<32x32xf32>, vector<32x4xf32>, vector<32x4xf32> -> vector<32x4xf32>
    %43 = vector.broadcast %5 : vector<32x1xf32> to vector<32x4xf32>
    %44 = arith.addf %42, %43 : vector<32x4xf32>
    %45 = vector.extract_strided_slice %44 {offsets = [0, 0], sizes = [8, 4], strides = [1, 1]} : vector<32x4xf32> to vector<8x4xf32>
    %46 = vector.extract_strided_slice %44 {offsets = [8, 0], sizes = [8, 4], strides = [1, 1]} : vector<32x4xf32> to vector<8x4xf32>
    %47 = vector.extract_strided_slice %44 {offsets = [16, 0], sizes = [8, 4], strides = [1, 1]} : vector<32x4xf32> to vector<8x4xf32>
    %48 = vector.extract_strided_slice %44 {offsets = [24, 0], sizes = [8, 4], strides = [1, 1]} : vector<32x4xf32> to vector<8x4xf32>
    %49 = tpu.concatenate %45, %46, %47, %48 in 1 : vector<8x4xf32>, vector<8x4xf32>, vector<8x4xf32>, vector<8x4xf32> -> vector<8x16xf32>
    %cst_46 = arith.constant 0.000000e+00 : f32
    %50 = vector.broadcast %cst_46 : f32 to vector<8x8xf32>
    %51 = vector.extract_strided_slice %49 {offsets = [0, 0], sizes = [8, 8], strides = [1, 1]} : vector<8x16xf32> to vector<8x8xf32>
    %52 = tpu.concatenate %50, %51 in 1 : vector<8x8xf32>, vector<8x8xf32> -> vector<8x16xf32>
    %cst_47 = arith.constant 0.000000e+00 : f32
    %53 = vector.broadcast %cst_47 : f32 to vector<8x4xf32>
    %54 = vector.extract_strided_slice %49 {offsets = [0, 0], sizes = [8, 12], strides = [1, 1]} : vector<8x16xf32> to vector<8x12xf32>
    %55 = tpu.concatenate %53, %54 in 1 : vector<8x4xf32>, vector<8x12xf32> -> vector<8x16xf32>
    %56 = vector.extract_strided_slice %49 {offsets = [0, 4], sizes = [8, 12], strides = [1, 1]} : vector<8x16xf32> to vector<8x12xf32>
    %cst_48 = arith.constant 0.000000e+00 : f32
    %57 = vector.broadcast %cst_48 : f32 to vector<8x4xf32>
    %58 = tpu.concatenate %56, %57 in 1 : vector<8x12xf32>, vector<8x4xf32> -> vector<8x16xf32>
    %59 = vector.extract_strided_slice %49 {offsets = [0, 8], sizes = [8, 8], strides = [1, 1]} : vector<8x16xf32> to vector<8x8xf32>
    %cst_49 = arith.constant 0.000000e+00 : f32
    %60 = vector.broadcast %cst_49 : f32 to vector<8x8xf32>
    %61 = tpu.concatenate %59, %60 in 1 : vector<8x8xf32>, vector<8x8xf32> -> vector<8x16xf32>
    %62 = tpu.concatenate %52, %55, %49, %58, %61 in 0 : vector<8x16xf32>, vector<8x16xf32>, vector<8x16xf32>, vector<8x16xf32>, vector<8x16xf32> -> vector<40x16xf32>
    %cst_50 = arith.constant dense<0.000000e+00> : vector<16x16xf32>
    %63 = tpu.matmul %6, %62, %cst_50 {dimension_numbers = #tpu.dot_dimension_numbers<[1], [0], [0], [1], [0, 0, 1, 1], [], []>} : vector<16x40xf32>, vector<40x16xf32>, vector<16x16xf32> -> vector<16x16xf32>
    %64 = vector.broadcast %7 : vector<16x1xf32> to vector<16x16xf32>
    %65 = arith.addf %63, %64 : vector<16x16xf32>
    %cst_51 = arith.constant 0.000000e+00 : f32
    %66 = vector.broadcast %cst_51 : f32 to vector<16x16xf32>
    %67 = arith.cmpf ogt, %65, %66 : vector<16x16xf32>
    %cst_52 = arith.constant 0.000000e+00 : f32
    %68 = vector.broadcast %cst_52 : f32 to vector<16x16xf32>
    %69 = arith.minimumf %65, %68 : vector<16x16xf32>
    %70 = math.exp %69 : vector<16x16xf32>
    %cst_53 = arith.constant 1.000000e+00 : f32
    %71 = vector.broadcast %cst_53 : f32 to vector<16x16xf32>
    %72 = arith.subf %70, %71 : vector<16x16xf32>
    %73 = arith.select %67, %65, %72 : vector<16x16xi1>, vector<16x16xf32>
    %74 = vector.extract_strided_slice %73 {offsets = [0, 0], sizes = [16, 4], strides = [1, 1]} : vector<16x16xf32> to vector<16x4xf32>
    %75 = vector.extract_strided_slice %73 {offsets = [0, 4], sizes = [16, 4], strides = [1, 1]} : vector<16x16xf32> to vector<16x4xf32>
    %76 = vector.extract_strided_slice %73 {offsets = [0, 8], sizes = [16, 4], strides = [1, 1]} : vector<16x16xf32> to vector<16x4xf32>
    %77 = vector.extract_strided_slice %73 {offsets = [0, 12], sizes = [16, 4], strides = [1, 1]} : vector<16x16xf32> to vector<16x4xf32>
    %78 = tpu.concatenate %74, %74, %75, %75, %76, %76, %77, %77 in 1 : vector<16x4xf32>, vector<16x4xf32>, vector<16x4xf32>, vector<16x4xf32>, vector<16x4xf32>, vector<16x4xf32>, vector<16x4xf32>, vector<16x4xf32> -> vector<16x32xf32>
    %cst_54 = arith.constant 0.000000e+00 : f32
    %79 = vector.broadcast %cst_54 : f32 to vector<16x8xf32>
    %80 = vector.extract_strided_slice %78 {offsets = [0, 0], sizes = [16, 24], strides = [1, 1]} : vector<16x32xf32> to vector<16x24xf32>
    %81 = tpu.concatenate %79, %80 in 1 : vector<16x8xf32>, vector<16x24xf32> -> vector<16x32xf32>
    %cst_55 = arith.constant 0.000000e+00 : f32
    %82 = vector.broadcast %cst_55 : f32 to vector<16x4xf32>
    %83 = vector.extract_strided_slice %78 {offsets = [0, 0], sizes = [16, 28], strides = [1, 1]} : vector<16x32xf32> to vector<16x28xf32>
    %84 = tpu.concatenate %82, %83 in 1 : vector<16x4xf32>, vector<16x28xf32> -> vector<16x32xf32>
    %85 = vector.extract_strided_slice %78 {offsets = [0, 4], sizes = [16, 28], strides = [1, 1]} : vector<16x32xf32> to vector<16x28xf32>
    %cst_56 = arith.constant 0.000000e+00 : f32
    %86 = vector.broadcast %cst_56 : f32 to vector<16x4xf32>
    %87 = tpu.concatenate %85, %86 in 1 : vector<16x28xf32>, vector<16x4xf32> -> vector<16x32xf32>
    %88 = vector.extract_strided_slice %78 {offsets = [0, 8], sizes = [16, 24], strides = [1, 1]} : vector<16x32xf32> to vector<16x24xf32>
    %cst_57 = arith.constant 0.000000e+00 : f32
    %89 = vector.broadcast %cst_57 : f32 to vector<16x8xf32>
    %90 = tpu.concatenate %88, %89 in 1 : vector<16x24xf32>, vector<16x8xf32> -> vector<16x32xf32>
    %91 = tpu.concatenate %81, %84, %78, %87, %90 in 0 : vector<16x32xf32>, vector<16x32xf32>, vector<16x32xf32>, vector<16x32xf32>, vector<16x32xf32> -> vector<80x32xf32>
    %cst_58 = arith.constant dense<0.000000e+00> : vector<16x32xf32>
    %92 = tpu.matmul %8, %91, %cst_58 {dimension_numbers = #tpu.dot_dimension_numbers<[1], [0], [0], [1], [0, 0, 1, 1], [], []>} : vector<16x80xf32>, vector<80x32xf32>, vector<16x32xf32> -> vector<16x32xf32>
    %93 = vector.broadcast %9 : vector<16x1xf32> to vector<16x32xf32>
    %94 = arith.addf %92, %93 : vector<16x32xf32>
    %cst_59 = arith.constant 0.000000e+00 : f32
    %95 = vector.broadcast %cst_59 : f32 to vector<16x32xf32>
    %96 = arith.cmpf ogt, %94, %95 : vector<16x32xf32>
    %cst_60 = arith.constant 0.000000e+00 : f32
    %97 = vector.broadcast %cst_60 : f32 to vector<16x32xf32>
    %98 = arith.minimumf %94, %97 : vector<16x32xf32>
    %99 = math.exp %98 : vector<16x32xf32>
    %cst_61 = arith.constant 1.000000e+00 : f32
    %100 = vector.broadcast %cst_61 : f32 to vector<16x32xf32>
    %101 = arith.subf %99, %100 : vector<16x32xf32>
    %102 = arith.select %96, %94, %101 : vector<16x32xi1>, vector<16x32xf32>
    %103 = vector.extract_strided_slice %102 {offsets = [0, 0], sizes = [16, 4], strides = [1, 1]} : vector<16x32xf32> to vector<16x4xf32>
    %104 = vector.extract_strided_slice %102 {offsets = [0, 4], sizes = [16, 4], strides = [1, 1]} : vector<16x32xf32> to vector<16x4xf32>
    %105 = vector.extract_strided_slice %102 {offsets = [0, 8], sizes = [16, 4], strides = [1, 1]} : vector<16x32xf32> to vector<16x4xf32>
    %106 = vector.extract_strided_slice %102 {offsets = [0, 12], sizes = [16, 4], strides = [1, 1]} : vector<16x32xf32> to vector<16x4xf32>
    %107 = vector.extract_strided_slice %102 {offsets = [0, 16], sizes = [16, 4], strides = [1, 1]} : vector<16x32xf32> to vector<16x4xf32>
    %108 = vector.extract_strided_slice %102 {offsets = [0, 20], sizes = [16, 4], strides = [1, 1]} : vector<16x32xf32> to vector<16x4xf32>
    %109 = vector.extract_strided_slice %102 {offsets = [0, 24], sizes = [16, 4], strides = [1, 1]} : vector<16x32xf32> to vector<16x4xf32>
    %110 = vector.extract_strided_slice %102 {offsets = [0, 28], sizes = [16, 4], strides = [1, 1]} : vector<16x32xf32> to vector<16x4xf32>
    %111 = tpu.concatenate %103, %103, %104, %104, %105, %105, %106, %106, %107, %107, %108, %108, %109, %109, %110, %110 in 1 : vector<16x4xf32>, vector<16x4xf32>, vector<16x4xf32>, vector<16x4xf32>, vector<16x4xf32>, vector<16x4xf32>, vector<16x4xf32>, vector<16x4xf32>, vector<16x4xf32>, vector<16x4xf32>, vector<16x4xf32>, vector<16x4xf32>, vector<16x4xf32>, vector<16x4xf32>, vector<16x4xf32>, vector<16x4xf32> -> vector<16x64xf32>
    %cst_62 = arith.constant 0.000000e+00 : f32
    %112 = vector.broadcast %cst_62 : f32 to vector<16x8xf32>
    %113 = vector.extract_strided_slice %111 {offsets = [0, 0], sizes = [16, 56], strides = [1, 1]} : vector<16x64xf32> to vector<16x56xf32>
    %114 = tpu.concatenate %112, %113 in 1 : vector<16x8xf32>, vector<16x56xf32> -> vector<16x64xf32>
    %cst_63 = arith.constant 0.000000e+00 : f32
    %115 = vector.broadcast %cst_63 : f32 to vector<16x4xf32>
    %116 = vector.extract_strided_slice %111 {offsets = [0, 0], sizes = [16, 60], strides = [1, 1]} : vector<16x64xf32> to vector<16x60xf32>
    %117 = tpu.concatenate %115, %116 in 1 : vector<16x4xf32>, vector<16x60xf32> -> vector<16x64xf32>
    %118 = vector.extract_strided_slice %111 {offsets = [0, 4], sizes = [16, 60], strides = [1, 1]} : vector<16x64xf32> to vector<16x60xf32>
    %cst_64 = arith.constant 0.000000e+00 : f32
    %119 = vector.broadcast %cst_64 : f32 to vector<16x4xf32>
    %120 = tpu.concatenate %118, %119 in 1 : vector<16x60xf32>, vector<16x4xf32> -> vector<16x64xf32>
    %121 = vector.extract_strided_slice %111 {offsets = [0, 8], sizes = [16, 56], strides = [1, 1]} : vector<16x64xf32> to vector<16x56xf32>
    %cst_65 = arith.constant 0.000000e+00 : f32
    %122 = vector.broadcast %cst_65 : f32 to vector<16x8xf32>
    %123 = tpu.concatenate %121, %122 in 1 : vector<16x56xf32>, vector<16x8xf32> -> vector<16x64xf32>
    %124 = tpu.concatenate %114, %117, %111, %120, %123 in 0 : vector<16x64xf32>, vector<16x64xf32>, vector<16x64xf32>, vector<16x64xf32>, vector<16x64xf32> -> vector<80x64xf32>
    %cst_66 = arith.constant dense<0.000000e+00> : vector<16x64xf32>
    %125 = tpu.matmul %10, %124, %cst_66 {dimension_numbers = #tpu.dot_dimension_numbers<[1], [0], [0], [1], [0, 0, 1, 1], [], []>} : vector<16x80xf32>, vector<80x64xf32>, vector<16x64xf32> -> vector<16x64xf32>
    %126 = vector.broadcast %11 : vector<16x1xf32> to vector<16x64xf32>
    %127 = arith.addf %125, %126 : vector<16x64xf32>
    %cst_67 = arith.constant 0.000000e+00 : f32
    %128 = vector.broadcast %cst_67 : f32 to vector<16x64xf32>
    %129 = arith.cmpf ogt, %127, %128 : vector<16x64xf32>
    %cst_68 = arith.constant 0.000000e+00 : f32
    %130 = vector.broadcast %cst_68 : f32 to vector<16x64xf32>
    %131 = arith.minimumf %127, %130 : vector<16x64xf32>
    %132 = math.exp %131 : vector<16x64xf32>
    %cst_69 = arith.constant 1.000000e+00 : f32
    %133 = vector.broadcast %cst_69 : f32 to vector<16x64xf32>
    %134 = arith.subf %132, %133 : vector<16x64xf32>
    %135 = arith.select %129, %127, %134 : vector<16x64xi1>, vector<16x64xf32>
    %cst_70 = arith.constant 0.000000e+00 : f32
    %136 = vector.broadcast %cst_70 : f32 to vector<16x8xf32>
    %137 = vector.extract_strided_slice %135 {offsets = [0, 0], sizes = [16, 56], strides = [1, 1]} : vector<16x64xf32> to vector<16x56xf32>
    %138 = tpu.concatenate %136, %137 in 1 : vector<16x8xf32>, vector<16x56xf32> -> vector<16x64xf32>
    %cst_71 = arith.constant 0.000000e+00 : f32
    %139 = vector.broadcast %cst_71 : f32 to vector<16x4xf32>
    %140 = vector.extract_strided_slice %135 {offsets = [0, 0], sizes = [16, 60], strides = [1, 1]} : vector<16x64xf32> to vector<16x60xf32>
    %141 = tpu.concatenate %139, %140 in 1 : vector<16x4xf32>, vector<16x60xf32> -> vector<16x64xf32>
    %142 = vector.extract_strided_slice %135 {offsets = [0, 4], sizes = [16, 60], strides = [1, 1]} : vector<16x64xf32> to vector<16x60xf32>
    %cst_72 = arith.constant 0.000000e+00 : f32
    %143 = vector.broadcast %cst_72 : f32 to vector<16x4xf32>
    %144 = tpu.concatenate %142, %143 in 1 : vector<16x60xf32>, vector<16x4xf32> -> vector<16x64xf32>
    %145 = vector.extract_strided_slice %135 {offsets = [0, 8], sizes = [16, 56], strides = [1, 1]} : vector<16x64xf32> to vector<16x56xf32>
    %cst_73 = arith.constant 0.000000e+00 : f32
    %146 = vector.broadcast %cst_73 : f32 to vector<16x8xf32>
    %147 = tpu.concatenate %145, %146 in 1 : vector<16x56xf32>, vector<16x8xf32> -> vector<16x64xf32>
    %148 = tpu.concatenate %138, %141, %135, %144, %147 in 0 : vector<16x64xf32>, vector<16x64xf32>, vector<16x64xf32>, vector<16x64xf32>, vector<16x64xf32> -> vector<80x64xf32>
    %cst_74 = arith.constant dense<0.000000e+00> : vector<16x64xf32>
    %149 = tpu.matmul %12, %148, %cst_74 {dimension_numbers = #tpu.dot_dimension_numbers<[1], [0], [0], [1], [0, 0, 1, 1], [], []>} : vector<16x80xf32>, vector<80x64xf32>, vector<16x64xf32> -> vector<16x64xf32>
    %150 = vector.broadcast %13 : vector<16x1xf32> to vector<16x64xf32>
    %151 = arith.addf %149, %150 : vector<16x64xf32>
    %152 = arith.addf %111, %151 : vector<16x64xf32>
    %cst_75 = arith.constant 0.000000e+00 : f32
    %153 = vector.broadcast %cst_75 : f32 to vector<16x64xf32>
    %154 = arith.cmpf ogt, %152, %153 : vector<16x64xf32>
    %cst_76 = arith.constant 0.000000e+00 : f32
    %155 = vector.broadcast %cst_76 : f32 to vector<16x64xf32>
    %156 = arith.minimumf %152, %155 : vector<16x64xf32>
    %157 = math.exp %156 : vector<16x64xf32>
    %cst_77 = arith.constant 1.000000e+00 : f32
    %158 = vector.broadcast %cst_77 : f32 to vector<16x64xf32>
    %159 = arith.subf %157, %158 : vector<16x64xf32>
    %160 = arith.select %154, %152, %159 : vector<16x64xi1>, vector<16x64xf32>
    %cst_78 = arith.constant 0.000000e+00 : f32
    %161 = vector.broadcast %cst_78 : f32 to vector<16x8xf32>
    %162 = vector.extract_strided_slice %160 {offsets = [0, 0], sizes = [16, 56], strides = [1, 1]} : vector<16x64xf32> to vector<16x56xf32>
    %163 = tpu.concatenate %161, %162 in 1 : vector<16x8xf32>, vector<16x56xf32> -> vector<16x64xf32>
    %cst_79 = arith.constant 0.000000e+00 : f32
    %164 = vector.broadcast %cst_79 : f32 to vector<16x4xf32>
    %165 = vector.extract_strided_slice %160 {offsets = [0, 0], sizes = [16, 60], strides = [1, 1]} : vector<16x64xf32> to vector<16x60xf32>
    %166 = tpu.concatenate %164, %165 in 1 : vector<16x4xf32>, vector<16x60xf32> -> vector<16x64xf32>
    %167 = vector.extract_strided_slice %160 {offsets = [0, 4], sizes = [16, 60], strides = [1, 1]} : vector<16x64xf32> to vector<16x60xf32>
    %cst_80 = arith.constant 0.000000e+00 : f32
    %168 = vector.broadcast %cst_80 : f32 to vector<16x4xf32>
    %169 = tpu.concatenate %167, %168 in 1 : vector<16x60xf32>, vector<16x4xf32> -> vector<16x64xf32>
    %170 = vector.extract_strided_slice %160 {offsets = [0, 8], sizes = [16, 56], strides = [1, 1]} : vector<16x64xf32> to vector<16x56xf32>
    %cst_81 = arith.constant 0.000000e+00 : f32
    %171 = vector.broadcast %cst_81 : f32 to vector<16x8xf32>
    %172 = tpu.concatenate %170, %171 in 1 : vector<16x56xf32>, vector<16x8xf32> -> vector<16x64xf32>
    %173 = tpu.concatenate %163, %166, %160, %169, %172 in 0 : vector<16x64xf32>, vector<16x64xf32>, vector<16x64xf32>, vector<16x64xf32>, vector<16x64xf32> -> vector<80x64xf32>
    %cst_82 = arith.constant dense<0.000000e+00> : vector<16x64xf32>
    %174 = tpu.matmul %14, %173, %cst_82 {dimension_numbers = #tpu.dot_dimension_numbers<[1], [0], [0], [1], [0, 0, 1, 1], [], []>} : vector<16x80xf32>, vector<80x64xf32>, vector<16x64xf32> -> vector<16x64xf32>
    %175 = vector.broadcast %15 : vector<16x1xf32> to vector<16x64xf32>
    %176 = arith.addf %174, %175 : vector<16x64xf32>
    %cst_83 = arith.constant 0.000000e+00 : f32
    %177 = vector.broadcast %cst_83 : f32 to vector<16x64xf32>
    %178 = arith.cmpf ogt, %176, %177 : vector<16x64xf32>
    %cst_84 = arith.constant 0.000000e+00 : f32
    %179 = vector.broadcast %cst_84 : f32 to vector<16x64xf32>
    %180 = arith.minimumf %176, %179 : vector<16x64xf32>
    %181 = math.exp %180 : vector<16x64xf32>
    %cst_85 = arith.constant 1.000000e+00 : f32
    %182 = vector.broadcast %cst_85 : f32 to vector<16x64xf32>
    %183 = arith.subf %181, %182 : vector<16x64xf32>
    %184 = arith.select %178, %176, %183 : vector<16x64xi1>, vector<16x64xf32>
    %cst_86 = arith.constant dense<0.000000e+00> : vector<4x64xf32>
    %185 = tpu.matmul %16, %184, %cst_86 {dimension_numbers = #tpu.dot_dimension_numbers<[1], [0], [0], [1], [0, 0, 1, 1], [], []>} : vector<4x16xf32>, vector<16x64xf32>, vector<4x64xf32> -> vector<4x64xf32>
    %186 = vector.broadcast %17 : vector<4x1xf32> to vector<4x64xf32>
    %187 = arith.addf %185, %186 : vector<4x64xf32>
    %c0_87 = arith.constant 0 : index
    %c0_88 = arith.constant 0 : index
    %c0_89 = arith.constant 0 : index
    %188 = vector.load %arg20[%c0_87, %c0_88, %c0_89] : memref<1x4x64xf32, #tpu.memory_space<vmem>>, vector<1x4x64xf32>
    %189 = vector.shape_cast %188 : vector<1x4x64xf32> to vector<4x64xf32>
    %190 = vector.shape_cast %187 : vector<4x64xf32> to vector<1x4x64xf32>
    tpu.vector_store %arg20[%c0_87, %c0_88, %c0_89], %190 {strides = array<i32>} : memref<1x4x64xf32, #tpu.memory_space<vmem>>, vector<1x4x64xf32>,
    return
  }
  func.func @transform_0(%arg0: i32) -> (i32, i32, i32) {
    %c0_i32 = arith.constant 0 : i32
    %c0_i32_0 = arith.constant 0 : i32
    %c0_i32_1 = arith.constant 0 : i32
    return %arg0, %c0_i32, %c0_i32_0 : i32, i32, i32
  }
  func.func @transform_1(%arg0: i32) -> (i32, i32) {
    %c0_i32 = arith.constant 0 : i32
    %c0_i32_0 = arith.constant 0 : i32
    %c0_i32_1 = arith.constant 0 : i32
    return %c0_i32, %c0_i32_0 : i32, i32
  }
  func.func @transform_2(%arg0: i32) -> (i32, i32) {
    %c0_i32 = arith.constant 0 : i32
    %c0_i32_0 = arith.constant 0 : i32
    %c0_i32_1 = arith.constant 0 : i32
    return %c0_i32, %c0_i32_0 : i32, i32
  }
  func.func @transform_3(%arg0: i32) -> (i32, i32) {
    %c0_i32 = arith.constant 0 : i32
    %c0_i32_0 = arith.constant 0 : i32
    %c0_i32_1 = arith.constant 0 : i32
    return %c0_i32, %c0_i32_0 : i32, i32
  }
  func.func @transform_4(%arg0: i32) -> (i32, i32) {
    %c0_i32 = arith.constant 0 : i32
    %c0_i32_0 = arith.constant 0 : i32
    %c0_i32_1 = arith.constant 0 : i32
    return %c0_i32, %c0_i32_0 : i32, i32
  }
  func.func @transform_5(%arg0: i32) -> (i32, i32) {
    %c0_i32 = arith.constant 0 : i32
    %c0_i32_0 = arith.constant 0 : i32
    %c0_i32_1 = arith.constant 0 : i32
    return %c0_i32, %c0_i32_0 : i32, i32
  }
  func.func @transform_6(%arg0: i32) -> (i32, i32) {
    %c0_i32 = arith.constant 0 : i32
    %c0_i32_0 = arith.constant 0 : i32
    %c0_i32_1 = arith.constant 0 : i32
    return %c0_i32, %c0_i32_0 : i32, i32
  }
  func.func @transform_7(%arg0: i32) -> (i32, i32) {
    %c0_i32 = arith.constant 0 : i32
    %c0_i32_0 = arith.constant 0 : i32
    %c0_i32_1 = arith.constant 0 : i32
    return %c0_i32, %c0_i32_0 : i32, i32
  }
  func.func @transform_8(%arg0: i32) -> (i32, i32) {
    %c0_i32 = arith.constant 0 : i32
    %c0_i32_0 = arith.constant 0 : i32
    %c0_i32_1 = arith.constant 0 : i32
    return %c0_i32, %c0_i32_0 : i32, i32
  }
  func.func @transform_9(%arg0: i32) -> (i32, i32) {
    %c0_i32 = arith.constant 0 : i32
    %c0_i32_0 = arith.constant 0 : i32
    %c0_i32_1 = arith.constant 0 : i32
    return %c0_i32, %c0_i32_0 : i32, i32
  }
  func.func @transform_10(%arg0: i32) -> (i32, i32) {
    %c0_i32 = arith.constant 0 : i32
    %c0_i32_0 = arith.constant 0 : i32
    %c0_i32_1 = arith.constant 0 : i32
    return %c0_i32, %c0_i32_0 : i32, i32
  }
  func.func @transform_11(%arg0: i32) -> (i32, i32) {
    %c0_i32 = arith.constant 0 : i32
    %c0_i32_0 = arith.constant 0 : i32
    %c0_i32_1 = arith.constant 0 : i32
    return %c0_i32, %c0_i32_0 : i32, i32
  }
  func.func @transform_12(%arg0: i32) -> (i32, i32) {
    %c0_i32 = arith.constant 0 : i32
    %c0_i32_0 = arith.constant 0 : i32
    %c0_i32_1 = arith.constant 0 : i32
    return %c0_i32, %c0_i32_0 : i32, i32
  }
  func.func @transform_13(%arg0: i32) -> (i32, i32) {
    %c0_i32 = arith.constant 0 : i32
    %c0_i32_0 = arith.constant 0 : i32
    %c0_i32_1 = arith.constant 0 : i32
    return %c0_i32, %c0_i32_0 : i32, i32
  }
  func.func @transform_14(%arg0: i32) -> (i32, i32) {
    %c0_i32 = arith.constant 0 : i32
    %c0_i32_0 = arith.constant 0 : i32
    %c0_i32_1 = arith.constant 0 : i32
    return %c0_i32, %c0_i32_0 : i32, i32
  }
  func.func @transform_15(%arg0: i32) -> (i32, i32) {
    %c0_i32 = arith.constant 0 : i32
    %c0_i32_0 = arith.constant 0 : i32
    %c0_i32_1 = arith.constant 0 : i32
    return %c0_i32, %c0_i32_0 : i32, i32
  }
  func.func @transform_16(%arg0: i32) -> (i32, i32) {
    %c0_i32 = arith.constant 0 : i32
    %c0_i32_0 = arith.constant 0 : i32
    %c0_i32_1 = arith.constant 0 : i32
    return %c0_i32, %c0_i32_0 : i32, i32
  }
  func.func @transform_17(%arg0: i32) -> (i32, i32) {
    %c0_i32 = arith.constant 0 : i32
    %c0_i32_0 = arith.constant 0 : i32
    %c0_i32_1 = arith.constant 0 : i32
    return %c0_i32, %c0_i32_0 : i32, i32
  }
  func.func @transform_18(%arg0: i32) -> (i32, i32) {
    %c0_i32 = arith.constant 0 : i32
    %c0_i32_0 = arith.constant 0 : i32
    %c0_i32_1 = arith.constant 0 : i32
    return %c0_i32, %c0_i32_0 : i32, i32
  }
  func.func @transform_19(%arg0: i32) -> (i32, i32, i32) {
    %c0_i32 = arith.constant 0 : i32
    %c0_i32_0 = arith.constant 0 : i32
    %c0_i32_1 = arith.constant 0 : i32
    return %arg0, %c0_i32, %c0_i32_0 : i32, i32, i32
  }
}

</mosaic_0001>

<llo_original>
// kernel: tpu_custom_call.1
$region0: #{tpu_custom_call.1}
  #allocation0 [shape = 'u32[]', space=smem, size = 0x4, offset = 0x4, fixed_abs, tag = 'smem constant byte address 0x4 - core index']
  #allocation1 [shape = 'u32[144,128]{1,0:T(1,128)}', space=vmem, size = 0x12000, scoped, tag = 'internal scratch']
  %s0 = inlined_call_operand.vmem [shape: f32[2,16,4], index: 0, kind: input, shape index: {}]
  %s1 = inlined_call_operand.vmem [shape: f32[32,16], index: 1, kind: input, shape index: {}]
  %s2 = inlined_call_operand.vmem [shape: f32[32,1], index: 2, kind: input, shape index: {}]
  %s3 = inlined_call_operand.vmem [shape: f32[32,32], index: 3, kind: input, shape index: {}]
  %s4 = inlined_call_operand.vmem [shape: f32[32,1], index: 4, kind: input, shape index: {}]
  %s5 = inlined_call_operand.vmem [shape: f32[32,32], index: 5, kind: input, shape index: {}]
  %s6 = inlined_call_operand.vmem [shape: f32[32,1], index: 6, kind: input, shape index: {}]
  %s7 = inlined_call_operand.vmem [shape: f32[16,40], index: 7, kind: input, shape index: {}]
  %s8 = inlined_call_operand.vmem [shape: f32[16,1], index: 8, kind: input, shape index: {}]
  %s9 = inlined_call_operand.vmem [shape: f32[16,80], index: 9, kind: input, shape index: {}]
  %s10 = inlined_call_operand.vmem [shape: f32[16,1], index: 10, kind: input, shape index: {}]
  %s11 = inlined_call_operand.vmem [shape: f32[16,80], index: 11, kind: input, shape index: {}]
  %s12 = inlined_call_operand.vmem [shape: f32[16,1], index: 12, kind: input, shape index: {}]
  %s13 = inlined_call_operand.vmem [shape: f32[16,80], index: 13, kind: input, shape index: {}]
  %s14 = inlined_call_operand.vmem [shape: f32[16,1], index: 14, kind: input, shape index: {}]
  %s15 = inlined_call_operand.vmem [shape: f32[16,80], index: 15, kind: input, shape index: {}]
  %s16 = inlined_call_operand.vmem [shape: f32[16,1], index: 16, kind: input, shape index: {}]
  %s17 = inlined_call_operand.vmem [shape: f32[4,16], index: 17, kind: input, shape index: {}]
  %s18 = inlined_call_operand.vmem [shape: f32[4,1], index: 18, kind: input, shape index: {}]
  %s19 = inlined_call_operand.hbm [shape: f32[2,4,64], index: 19, kind: output, shape index: {}]
  %s20 = sld [smem:[#allocation0]]
  $region109: #{tpu_custom_call.1} parent=0
    _
  %s22 = ssub.s32 1, %s20
  %s23 = scalar_select 0, %s22, %s20
  $region1: #{tpu_custom_call.1} parent=0
    #allocation2 [shape = 'u8[4096]{0}', space=vmem, size = 0x1000, scoped, tag = 'output window, operand 0']
    #allocation3 [shape = 's32[2]{0}', space=sflag, size = 0x8, scoped, tag = 'scoped memory for tpu_custom_call.1']
    %24 = vsyncpa [#allocation3], 0
    %s25 = scalar_lea.sflag [#allocation3], 1
    %26 = vsyncpa %s25, 0
    loop: start=0, step=1, limit=4
    $region2: #{tpu_custom_call.1} parent=1 // loop_pre_header
      _
    $region3: #{tpu_custom_call.1} parent=1 // loop_header
      %s28 = sphi 0, %s32
      %p29 = scmp.ge.s32.totalorder %s28, 4
      %s38 = sphi 0, %s40
      %s41 = sphi 0, %s38
      %s42 = sphi 0, %s41
      %s58 = sphi 0, %s42
      %s62 = sphi 0, %s62
      %s64 = sphi 0, %s62
      %s65 = sphi 0, %s64
      %s79 = sphi 0, %s65
      %s83 = sphi 0, %s83
      %s85 = sphi 0, %s83
      %s86 = sphi 0, %s85
      %s100 = sphi 0, %s86
      %s104 = sphi 0, %s104
      %s106 = sphi 0, %s104
      %s107 = sphi 0, %s106
      %s121 = sphi 0, %s107
      %s125 = sphi 0, %s125
      %s127 = sphi 0, %s125
      %s128 = sphi 0, %s127
      %s142 = sphi 0, %s128
      %s146 = sphi 0, %s146
      %s148 = sphi 0, %s146
      %s149 = sphi 0, %s148
      %s163 = sphi 0, %s149
      %s167 = sphi 0, %s167
      %s169 = sphi 0, %s167
      %s170 = sphi 0, %s169
      %s184 = sphi 0, %s170
      %s188 = sphi 0, %s188
      %s190 = sphi 0, %s188
      %s191 = sphi 0, %s190
      %s205 = sphi 0, %s191
      %s209 = sphi 0, %s209
      %s211 = sphi 0, %s209
      %s212 = sphi 0, %s211
      %s226 = sphi 0, %s212
      %s230 = sphi 0, %s230
      %s232 = sphi 0, %s230
      %s233 = sphi 0, %s232
      %s247 = sphi 0, %s233
      %s251 = sphi 0, %s251
      %s253 = sphi 0, %s251
      %s254 = sphi 0, %s253
      %s268 = sphi 0, %s254
      %s272 = sphi 0, %s272
      %s274 = sphi 0, %s272
      %s275 = sphi 0, %s274
      %s289 = sphi 0, %s275
      %s293 = sphi 0, %s293
      %s295 = sphi 0, %s293
      %s296 = sphi 0, %s295
      %s310 = sphi 0, %s296
      %s314 = sphi 0, %s314
      %s316 = sphi 0, %s314
      %s317 = sphi 0, %s316
      %s331 = sphi 0, %s317
      %s335 = sphi 0, %s335
      %s337 = sphi 0, %s335
      %s338 = sphi 0, %s337
      %s352 = sphi 0, %s338
      %s356 = sphi 0, %s356
      %s358 = sphi 0, %s356
      %s359 = sphi 0, %s358
      %s373 = sphi 0, %s359
      %s377 = sphi 0, %s377
      %s379 = sphi 0, %s377
      %s380 = sphi 0, %s379
      %s394 = sphi 0, %s380
      %s398 = sphi 0, %s398
      %s400 = sphi 0, %s398
      %s401 = sphi 0, %s400
      %s415 = sphi 0, %s401
      %s419 = sphi 0, %s419
      %s421 = sphi 0, %s419
      %s422 = sphi 0, %s421
      %s436 = sphi 0, %s422
      %s442 = sphi 0, %s444
      %s445 = sphi 0, %s442
      %s446 = sphi 0, %s445
      %s462 = sphi 0, %s446
    $region4: #{tpu_custom_call.1} parent=1 // loop_header_branch
      %31 = sbr.rel (%p29) target = $region8
    $region5: #{tpu_custom_call.1} parent=1 // loop_body
      %s33 = ssub.s32 %s28, 1
      %s34 = ssub.s32 %s28, 2
      %s35 = sadd.s32 %s28, 1
      %s36 = ssub.s32 %s28, %s35
      %p37 = scmp.eq.s32.totalorder %s36, 0
      %s39 = sadd.s32 %s38, 1
      %s40 = scalar_select %p37, %s38, %s39
      %p43 = pneg %p37
      %p44 = scmp.eq.s32.totalorder %s28, 1
      %p45 = por %p43, %p44
      %p46 = scmp.ne.s32.totalorder %s38, %s41
      %p47 = scmp.eq.s32.totalorder %s28, 0
      %p48 = por %p46, %p47
      %p49 = scmp.ne.s32.totalorder %s38, %s41
      %p50 = scmp.eq.s32.totalorder %s33, 1
      %p51 = por %p49, %p50
      %p52 = scmp.ne.s32.totalorder %s41, %s42
      %p53 = scmp.eq.s32.totalorder %s33, 0
      %p54 = por %p52, %p53
      %p55 = scmp.ne.s32.totalorder %s41, %s42
      %p56 = scmp.eq.s32.totalorder %s34, 1
      %p57 = por %p55, %p56
      %p59 = scmp.ne.s32.totalorder %s42, %s58
      %p60 = scmp.eq.s32.totalorder %s34, 0
      %p61 = por %p59, %p60
      %s63 = sadd.s32 %s62, 1
      %p66 = scmp.eq.s32.totalorder %s28, 1
      %p67 = scmp.ne.s32.totalorder %s62, %s64
      %p68 = scmp.eq.s32.totalorder %s28, 0
      %p69 = por %p67, %p68
      %p70 = scmp.ne.s32.totalorder %s62, %s64
      %p71 = scmp.eq.s32.totalorder %s33, 1
      %p72 = por %p70, %p71
      %p73 = scmp.ne.s32.totalorder %s64, %s65
      %p74 = scmp.eq.s32.totalorder %s33, 0
      %p75 = por %p73, %p74
      %p76 = scmp.ne.s32.totalorder %s64, %s65
      %p77 = scmp.eq.s32.totalorder %s34, 1
      %p78 = por %p76, %p77
      %p80 = scmp.ne.s32.totalorder %s65, %s79
      %p81 = scmp.eq.s32.totalorder %s34, 0
      %p82 = por %p80, %p81
      %s84 = sadd.s32 %s83, 1
      %p87 = scmp.eq.s32.totalorder %s28, 1
      %p88 = scmp.ne.s32.totalorder %s83, %s85
      %p89 = scmp.eq.s32.totalorder %s28, 0
      %p90 = por %p88, %p89
      %p91 = scmp.ne.s32.totalorder %s83, %s85
      %p92 = scmp.eq.s32.totalorder %s33, 1
      %p93 = por %p91, %p92
      %p94 = scmp.ne.s32.totalorder %s85, %s86
      %p95 = scmp.eq.s32.totalorder %s33, 0
      %p96 = por %p94, %p95
      %p97 = scmp.ne.s32.totalorder %s85, %s86
      %p98 = scmp.eq.s32.totalorder %s34, 1
      %p99 = por %p97, %p98
      %p101 = scmp.ne.s32.totalorder %s86, %s100
      %p102 = scmp.eq.s32.totalorder %s34, 0
      %p103 = por %p101, %p102
      %s105 = sadd.s32 %s104, 1
      %p108 = scmp.eq.s32.totalorder %s28, 1
      %p109 = scmp.ne.s32.totalorder %s104, %s106
      %p110 = scmp.eq.s32.totalorder %s28, 0
      %p111 = por %p109, %p110
      %p112 = scmp.ne.s32.totalorder %s104, %s106
      %p113 = scmp.eq.s32.totalorder %s33, 1
      %p114 = por %p112, %p113
      %p115 = scmp.ne.s32.totalorder %s106, %s107
      %p116 = scmp.eq.s32.totalorder %s33, 0
      %p117 = por %p115, %p116
      %p118 = scmp.ne.s32.totalorder %s106, %s107
      %p119 = scmp.eq.s32.totalorder %s34, 1
      %p120 = por %p118, %p119
      %p122 = scmp.ne.s32.totalorder %s107, %s121
      %p123 = scmp.eq.s32.totalorder %s34, 0
      %p124 = por %p122, %p123
      %s126 = sadd.s32 %s125, 1
      %p129 = scmp.eq.s32.totalorder %s28, 1
      %p130 = scmp.ne.s32.totalorder %s125, %s127
      %p131 = scmp.eq.s32.totalorder %s28, 0
      %p132 = por %p130, %p131
      %p133 = scmp.ne.s32.totalorder %s125, %s127
      %p134 = scmp.eq.s32.totalorder %s33, 1
      %p135 = por %p133, %p134
      %p136 = scmp.ne.s32.totalorder %s127, %s128
      %p137 = scmp.eq.s32.totalorder %s33, 0
      %p138 = por %p136, %p137
      %p139 = scmp.ne.s32.totalorder %s127, %s128
      %p140 = scmp.eq.s32.totalorder %s34, 1
      %p141 = por %p139, %p140
      %p143 = scmp.ne.s32.totalorder %s128, %s142
      %p144 = scmp.eq.s32.totalorder %s34, 0
      %p145 = por %p143, %p144
      %s147 = sadd.s32 %s146, 1
      %p150 = scmp.eq.s32.totalorder %s28, 1
      %p151 = scmp.ne.s32.totalorder %s146, %s148
      %p152 = scmp.eq.s32.totalorder %s28, 0
      %p153 = por %p151, %p152
      %p154 = scmp.ne.s32.totalorder %s146, %s148
      %p155 = scmp.eq.s32.totalorder %s33, 1
      %p156 = por %p154, %p155
      %p157 = scmp.ne.s32.totalorder %s148, %s149
      %p158 = scmp.eq.s32.totalorder %s33, 0
      %p159 = por %p157, %p158
      %p160 = scmp.ne.s32.totalorder %s148, %s149
      %p161 = scmp.eq.s32.totalorder %s34, 1
      %p162 = por %p160, %p161
      %p164 = scmp.ne.s32.totalorder %s149, %s163
      %p165 = scmp.eq.s32.totalorder %s34, 0
      %p166 = por %p164, %p165
      %s168 = sadd.s32 %s167, 1
      %p171 = scmp.eq.s32.totalorder %s28, 1
      %p172 = scmp.ne.s32.totalorder %s167, %s169
      %p173 = scmp.eq.s32.totalorder %s28, 0
      %p174 = por %p172, %p173
      %p175 = scmp.ne.s32.totalorder %s167, %s169
      %p176 = scmp.eq.s32.totalorder %s33, 1
      %p177 = por %p175, %p176
      %p178 = scmp.ne.s32.totalorder %s169, %s170
      %p179 = scmp.eq.s32.totalorder %s33, 0
      %p180 = por %p178, %p179
      %p181 = scmp.ne.s32.totalorder %s169, %s170
      %p182 = scmp.eq.s32.totalorder %s34, 1
      %p183 = por %p181, %p182
      %p185 = scmp.ne.s32.totalorder %s170, %s184
      %p186 = scmp.eq.s32.totalorder %s34, 0
      %p187 = por %p185, %p186
      %s189 = sadd.s32 %s188, 1
      %p192 = scmp.eq.s32.totalorder %s28, 1
      %p193 = scmp.ne.s32.totalorder %s188, %s190
      %p194 = scmp.eq.s32.totalorder %s28, 0
      %p195 = por %p193, %p194
      %p196 = scmp.ne.s32.totalorder %s188, %s190
      %p197 = scmp.eq.s32.totalorder %s33, 1
      %p198 = por %p196, %p197
      %p199 = scmp.ne.s32.totalorder %s190, %s191
      %p200 = scmp.eq.s32.totalorder %s33, 0
      %p201 = por %p199, %p200
      %p202 = scmp.ne.s32.totalorder %s190, %s191
      %p203 = scmp.eq.s32.totalorder %s34, 1
      %p204 = por %p202, %p203
      %p206 = scmp.ne.s32.totalorder %s191, %s205
      %p207 = scmp.eq.s32.totalorder %s34, 0
      %p208 = por %p206, %p207
      %s210 = sadd.s32 %s209, 1
      %p213 = scmp.eq.s32.totalorder %s28, 1
      %p214 = scmp.ne.s32.totalorder %s209, %s211
      %p215 = scmp.eq.s32.totalorder %s28, 0
      %p216 = por %p214, %p215
      %p217 = scmp.ne.s32.totalorder %s209, %s211
      %p218 = scmp.eq.s32.totalorder %s33, 1
      %p219 = por %p217, %p218
      %p220 = scmp.ne.s32.totalorder %s211, %s212
      %p221 = scmp.eq.s32.totalorder %s33, 0
      %p222 = por %p220, %p221
      %p223 = scmp.ne.s32.totalorder %s211, %s212
      %p224 = scmp.eq.s32.totalorder %s34, 1
      %p225 = por %p223, %p224
      %p227 = scmp.ne.s32.totalorder %s212, %s226
      %p228 = scmp.eq.s32.totalorder %s34, 0
      %p229 = por %p227, %p228
      %s231 = sadd.s32 %s230, 1
      %p234 = scmp.eq.s32.totalorder %s28, 1
      %p235 = scmp.ne.s32.totalorder %s230, %s232
      %p236 = scmp.eq.s32.totalorder %s28, 0
      %p237 = por %p235, %p236
      %p238 = scmp.ne.s32.totalorder %s230, %s232
      %p239 = scmp.eq.s32.totalorder %s33, 1
      %p240 = por %p238, %p239
      %p241 = scmp.ne.s32.totalorder %s232, %s233
      %p242 = scmp.eq.s32.totalorder %s33, 0
      %p243 = por %p241, %p242
      %p244 = scmp.ne.s32.totalorder %s232, %s233
      %p245 = scmp.eq.s32.totalorder %s34, 1
      %p246 = por %p244, %p245
      %p248 = scmp.ne.s32.totalorder %s233, %s247
      %p249 = scmp.eq.s32.totalorder %s34, 0
      %p250 = por %p248, %p249
      %s252 = sadd.s32 %s251, 1
      %p255 = scmp.eq.s32.totalorder %s28, 1
      %p256 = scmp.ne.s32.totalorder %s251, %s253
      %p257 = scmp.eq.s32.totalorder %s28, 0
      %p258 = por %p256, %p257
      %p259 = scmp.ne.s32.totalorder %s251, %s253
      %p260 = scmp.eq.s32.totalorder %s33, 1
      %p261 = por %p259, %p260
      %p262 = scmp.ne.s32.totalorder %s253, %s254
      %p263 = scmp.eq.s32.totalorder %s33, 0
      %p264 = por %p262, %p263
      %p265 = scmp.ne.s32.totalorder %s253, %s254
      %p266 = scmp.eq.s32.totalorder %s34, 1
      %p267 = por %p265, %p266
      %p269 = scmp.ne.s32.totalorder %s254, %s268
      %p270 = scmp.eq.s32.totalorder %s34, 0
      %p271 = por %p269, %p270
      %s273 = sadd.s32 %s272, 1
      %p276 = scmp.eq.s32.totalorder %s28, 1
      %p277 = scmp.ne.s32.totalorder %s272, %s274
      %p278 = scmp.eq.s32.totalorder %s28, 0
      %p279 = por %p277, %p278
      %p280 = scmp.ne.s32.totalorder %s272, %s274
      %p281 = scmp.eq.s32.totalorder %s33, 1
      %p282 = por %p280, %p281
      %p283 = scmp.ne.s32.totalorder %s274, %s275
      %p284 = scmp.eq.s32.totalorder %s33, 0
      %p285 = por %p283, %p284
      %p286 = scmp.ne.s32.totalorder %s274, %s275
      %p287 = scmp.eq.s32.totalorder %s34, 1
      %p288 = por %p286, %p287
      %p290 = scmp.ne.s32.totalorder %s275, %s289
      %p291 = scmp.eq.s32.totalorder %s34, 0
      %p292 = por %p290, %p291
      %s294 = sadd.s32 %s293, 1
      %p297 = scmp.eq.s32.totalorder %s28, 1
      %p298 = scmp.ne.s32.totalorder %s293, %s295
      %p299 = scmp.eq.s32.totalorder %s28, 0
      %p300 = por %p298, %p299
      %p301 = scmp.ne.s32.totalorder %s293, %s295
      %p302 = scmp.eq.s32.totalorder %s33, 1
      %p303 = por %p301, %p302
      %p304 = scmp.ne.s32.totalorder %s295, %s296
      %p305 = scmp.eq.s32.totalorder %s33, 0
      %p306 = por %p304, %p305
      %p307 = scmp.ne.s32.totalorder %s295, %s296
      %p308 = scmp.eq.s32.totalorder %s34, 1
      %p309 = por %p307, %p308
      %p311 = scmp.ne.s32.totalorder %s296, %s310
      %p312 = scmp.eq.s32.totalorder %s34, 0
      %p313 = por %p311, %p312
      %s315 = sadd.s32 %s314, 1
      %p318 = scmp.eq.s32.totalorder %s28, 1
      %p319 = scmp.ne.s32.totalorder %s314, %s316
      %p320 = scmp.eq.s32.totalorder %s28, 0
      %p321 = por %p319, %p320
      %p322 = scmp.ne.s32.totalorder %s314, %s316
      %p323 = scmp.eq.s32.totalorder %s33, 1
      %p324 = por %p322, %p323
      %p325 = scmp.ne.s32.totalorder %s316, %s317
      %p326 = scmp.eq.s32.totalorder %s33, 0
      %p327 = por %p325, %p326
      %p328 = scmp.ne.s32.totalorder %s316, %s317
      %p329 = scmp.eq.s32.totalorder %s34, 1
      %p330 = por %p328, %p329
      %p332 = scmp.ne.s32.totalorder %s317, %s331
      %p333 = scmp.eq.s32.totalorder %s34, 0
      %p334 = por %p332, %p333
      %s336 = sadd.s32 %s335, 1
      %p339 = scmp.eq.s32.totalorder %s28, 1
      %p340 = scmp.ne.s32.totalorder %s335, %s337
      %p341 = scmp.eq.s32.totalorder %s28, 0
      %p342 = por %p340, %p341
      %p343 = scmp.ne.s32.totalorder %s335, %s337
      %p344 = scmp.eq.s32.totalorder %s33, 1
      %p345 = por %p343, %p344
      %p346 = scmp.ne.s32.totalorder %s337, %s338
      %p347 = scmp.eq.s32.totalorder %s33, 0
      %p348 = por %p346, %p347
      %p349 = scmp.ne.s32.totalorder %s337, %s338
      %p350 = scmp.eq.s32.totalorder %s34, 1
      %p351 = por %p349, %p350
      %p353 = scmp.ne.s32.totalorder %s338, %s352
      %p354 = scmp.eq.s32.totalorder %s34, 0
      %p355 = por %p353, %p354
      %s357 = sadd.s32 %s356, 1
      %p360 = scmp.eq.s32.totalorder %s28, 1
      %p361 = scmp.ne.s32.totalorder %s356, %s358
      %p362 = scmp.eq.s32.totalorder %s28, 0
      %p363 = por %p361, %p362
      %p364 = scmp.ne.s32.totalorder %s356, %s358
      %p365 = scmp.eq.s32.totalorder %s33, 1
      %p366 = por %p364, %p365
      %p367 = scmp.ne.s32.totalorder %s358, %s359
      %p368 = scmp.eq.s32.totalorder %s33, 0
      %p369 = por %p367, %p368
      %p370 = scmp.ne.s32.totalorder %s358, %s359
      %p371 = scmp.eq.s32.totalorder %s34, 1
      %p372 = por %p370, %p371
      %p374 = scmp.ne.s32.totalorder %s359, %s373
      %p375 = scmp.eq.s32.totalorder %s34, 0
      %p376 = por %p374, %p375
      %s378 = sadd.s32 %s377, 1
      %p381 = scmp.eq.s32.totalorder %s28, 1
      %p382 = scmp.ne.s32.totalorder %s377, %s379
      %p383 = scmp.eq.s32.totalorder %s28, 0
      %p384 = por %p382, %p383
      %p385 = scmp.ne.s32.totalorder %s377, %s379
      %p386 = scmp.eq.s32.totalorder %s33, 1
      %p387 = por %p385, %p386
      %p388 = scmp.ne.s32.totalorder %s379, %s380
      %p389 = scmp.eq.s32.totalorder %s33, 0
      %p390 = por %p388, %p389
      %p391 = scmp.ne.s32.totalorder %s379, %s380
      %p392 = scmp.eq.s32.totalorder %s34, 1
      %p393 = por %p391, %p392
      %p395 = scmp.ne.s32.totalorder %s380, %s394
      %p396 = scmp.eq.s32.totalorder %s34, 0
      %p397 = por %p395, %p396
      %s399 = sadd.s32 %s398, 1
      %p402 = scmp.eq.s32.totalorder %s28, 1
      %p403 = scmp.ne.s32.totalorder %s398, %s400
      %p404 = scmp.eq.s32.totalorder %s28, 0
      %p405 = por %p403, %p404
      %p406 = scmp.ne.s32.totalorder %s398, %s400
      %p407 = scmp.eq.s32.totalorder %s33, 1
      %p408 = por %p406, %p407
      %p409 = scmp.ne.s32.totalorder %s400, %s401
      %p410 = scmp.eq.s32.totalorder %s33, 0
      %p411 = por %p409, %p410
      %p412 = scmp.ne.s32.totalorder %s400, %s401
      %p413 = scmp.eq.s32.totalorder %s34, 1
      %p414 = por %p412, %p413
      %p416 = scmp.ne.s32.totalorder %s401, %s415
      %p417 = scmp.eq.s32.totalorder %s34, 0
      %p418 = por %p416, %p417
      %s420 = sadd.s32 %s419, 1
      %p423 = scmp.eq.s32.totalorder %s28, 1
      %p424 = scmp.ne.s32.totalorder %s419, %s421
      %p425 = scmp.eq.s32.totalorder %s28, 0
      %p426 = por %p424, %p425
      %p427 = scmp.ne.s32.totalorder %s419, %s421
      %p428 = scmp.eq.s32.totalorder %s33, 1
      %p429 = por %p427, %p428
      %p430 = scmp.ne.s32.totalorder %s421, %s422
      %p431 = scmp.eq.s32.totalorder %s33, 0
      %p432 = por %p430, %p431
      %p433 = scmp.ne.s32.totalorder %s421, %s422
      %p434 = scmp.eq.s32.totalorder %s34, 1
      %p435 = por %p433, %p434
      %p437 = scmp.ne.s32.totalorder %s422, %s436
      %p438 = scmp.eq.s32.totalorder %s34, 0
      %p439 = por %p437, %p438
      %s440 = ssub.s32 %s28, %s35
      %p441 = scmp.eq.s32.totalorder %s440, 0
      %s443 = sadd.s32 %s442, 1
      %s444 = scalar_select %p441, %s442, %s443
      %p447 = pneg %p441
      %p448 = scmp.eq.s32.totalorder %s28, 1
      %p449 = por %p447, %p448
      %p450 = scmp.ne.s32.totalorder %s442, %s445
      %p451 = scmp.eq.s32.totalorder %s28, 0
      %p452 = por %p450, %p451
      %p453 = scmp.ne.s32.totalorder %s442, %s445
      %p454 = scmp.eq.s32.totalorder %s33, 1
      %p455 = por %p453, %p454
      %p456 = scmp.ne.s32.totalorder %s445, %s446
      %p457 = scmp.eq.s32.totalorder %s33, 0
      %p458 = por %p456, %p457
      %p459 = scmp.ne.s32.totalorder %s445, %s446
      %p460 = scmp.eq.s32.totalorder %s34, 1
      %p461 = por %p459, %p460
      %p463 = scmp.ne.s32.totalorder %s446, %s462
      %p464 = scmp.eq.s32.totalorder %s34, 0
      %p465 = por %p463, %p464
      %p466 = scmp.le.s32.totalorder 1, %s28
      %p467 = scmp.lt.s32.totalorder %s28, 3
      %p468 = pnand %p466, %p467
      %p469 = pneg %p468
      // Predicated region
      $region9: #{tpu_custom_call.1} parent=5 // pred_check
        _
      $region10: #{tpu_custom_call.1} parent=5 // pred_check_branch
        %471 = sbr.rel (%p468) target = $region12
      $region11: #{tpu_custom_call.1} parent=5 // pred_region
        %s472 = ssub.s32 %s28, 1
        // Predicated region
        $region13: #{tpu_custom_call.1} parent=11 // pred_check
          %p473 = pneg %p75
        $region14: #{tpu_custom_call.1} parent=11 // pred_check_branch
          %475 = sbr.rel (%p473) target = $region16
        $region15: #{tpu_custom_call.1} parent=11 // pred_region
          _
        $region16: #{tpu_custom_call.1} parent=11 // pred_fallthru
          _
        // Predicated region
        $region17: #{tpu_custom_call.1} parent=11 // pred_check
          %p476 = pneg %p96
        $region18: #{tpu_custom_call.1} parent=11 // pred_check_branch
          %478 = sbr.rel (%p476) target = $region20
        $region19: #{tpu_custom_call.1} parent=11 // pred_region
          _
        $region20: #{tpu_custom_call.1} parent=11 // pred_fallthru
          _
        // Predicated region
        $region21: #{tpu_custom_call.1} parent=11 // pred_check
          %p479 = pneg %p117
        $region22: #{tpu_custom_call.1} parent=11 // pred_check_branch
          %481 = sbr.rel (%p479) target = $region24
        $region23: #{tpu_custom_call.1} parent=11 // pred_region
          _
        $region24: #{tpu_custom_call.1} parent=11 // pred_fallthru
          _
        // Predicated region
        $region25: #{tpu_custom_call.1} parent=11 // pred_check
          %p482 = pneg %p138
        $region26: #{tpu_custom_call.1} parent=11 // pred_check_branch
          %484 = sbr.rel (%p482) target = $region28
        $region27: #{tpu_custom_call.1} parent=11 // pred_region
          _
        $region28: #{tpu_custom_call.1} parent=11 // pred_fallthru
          _
        // Predicated region
        $region29: #{tpu_custom_call.1} parent=11 // pred_check
          %p485 = pneg %p159
        $region30: #{tpu_custom_call.1} parent=11 // pred_check_branch
          %487 = sbr.rel (%p485) target = $region32
        $region31: #{tpu_custom_call.1} parent=11 // pred_region
          _
        $region32: #{tpu_custom_call.1} parent=11 // pred_fallthru
          _
        // Predicated region
        $region33: #{tpu_custom_call.1} parent=11 // pred_check
          %p488 = pneg %p180
        $region34: #{tpu_custom_call.1} parent=11 // pred_check_branch
          %490 = sbr.rel (%p488) target = $region36
        $region35: #{tpu_custom_call.1} parent=11 // pred_region
          _
        $region36: #{tpu_custom_call.1} parent=11 // pred_fallthru
          _
        // Predicated region
        $region37: #{tpu_custom_call.1} parent=11 // pred_check
          %p491 = pneg %p201
        $region38: #{tpu_custom_call.1} parent=11 // pred_check_branch
          %493 = sbr.rel (%p491) target = $region40
        $region39: #{tpu_custom_call.1} parent=11 // pred_region
          _
        $region40: #{tpu_custom_call.1} parent=11 // pred_fallthru
          _
        // Predicated region
        $region41: #{tpu_custom_call.1} parent=11 // pred_check
          %p494 = pneg %p222
        $region42: #{tpu_custom_call.1} parent=11 // pred_check_branch
          %496 = sbr.rel (%p494) target = $region44
        $region43: #{tpu_custom_call.1} parent=11 // pred_region
          _
        $region44: #{tpu_custom_call.1} parent=11 // pred_fallthru
          _
        // Predicated region
        $region45: #{tpu_custom_call.1} parent=11 // pred_check
          %p497 = pneg %p243
        $region46: #{tpu_custom_call.1} parent=11 // pred_check_branch
          %499 = sbr.rel (%p497) target = $region48
        $region47: #{tpu_custom_call.1} parent=11 // pred_region
          _
        $region48: #{tpu_custom_call.1} parent=11 // pred_fallthru
          _
        // Predicated region
        $region49: #{tpu_custom_call.1} parent=11 // pred_check
          %p500 = pneg %p264
        $region50: #{tpu_custom_call.1} parent=11 // pred_check_branch
          %502 = sbr.rel (%p500) target = $region52
        $region51: #{tpu_custom_call.1} parent=11 // pred_region
          _
        $region52: #{tpu_custom_call.1} parent=11 // pred_fallthru
          _
        // Predicated region
        $region53: #{tpu_custom_call.1} parent=11 // pred_check
          %p503 = pneg %p285
        $region54: #{tpu_custom_call.1} parent=11 // pred_check_branch
          %505 = sbr.rel (%p503) target = $region56
        $region55: #{tpu_custom_call.1} parent=11 // pred_region
          _
        $region56: #{tpu_custom_call.1} parent=11 // pred_fallthru
          _
        // Predicated region
        $region57: #{tpu_custom_call.1} parent=11 // pred_check
          %p506 = pneg %p306
        $region58: #{tpu_custom_call.1} parent=11 // pred_check_branch
          %508 = sbr.rel (%p506) target = $region60
        $region59: #{tpu_custom_call.1} parent=11 // pred_region
          _
        $region60: #{tpu_custom_call.1} parent=11 // pred_fallthru
          _
        // Predicated region
        $region61: #{tpu_custom_call.1} parent=11 // pred_check
          %p509 = pneg %p327
        $region62: #{tpu_custom_call.1} parent=11 // pred_check_branch
          %511 = sbr.rel (%p509) target = $region64
        $region63: #{tpu_custom_call.1} parent=11 // pred_region
          _
        $region64: #{tpu_custom_call.1} parent=11 // pred_fallthru
          _
        // Predicated region
        $region65: #{tpu_custom_call.1} parent=11 // pred_check
          %p512 = pneg %p348
        $region66: #{tpu_custom_call.1} parent=11 // pred_check_branch
          %514 = sbr.rel (%p512) target = $region68
        $region67: #{tpu_custom_call.1} parent=11 // pred_region
          _
        $region68: #{tpu_custom_call.1} parent=11 // pred_fallthru
          _
        // Predicated region
        $region69: #{tpu_custom_call.1} parent=11 // pred_check
          %p515 = pneg %p369
        $region70: #{tpu_custom_call.1} parent=11 // pred_check_branch
          %517 = sbr.rel (%p515) target = $region72
        $region71: #{tpu_custom_call.1} parent=11 // pred_region
          _
        $region72: #{tpu_custom_call.1} parent=11 // pred_fallthru
          _
        // Predicated region
        $region73: #{tpu_custom_call.1} parent=11 // pred_check
          %p518 = pneg %p390
        $region74: #{tpu_custom_call.1} parent=11 // pred_check_branch
          %520 = sbr.rel (%p518) target = $region76
        $region75: #{tpu_custom_call.1} parent=11 // pred_region
          _
        $region76: #{tpu_custom_call.1} parent=11 // pred_fallthru
          _
        // Predicated region
        $region77: #{tpu_custom_call.1} parent=11 // pred_check
          %p521 = pneg %p411
        $region78: #{tpu_custom_call.1} parent=11 // pred_check_branch
          %523 = sbr.rel (%p521) target = $region80
        $region79: #{tpu_custom_call.1} parent=11 // pred_region
          _
        $region80: #{tpu_custom_call.1} parent=11 // pred_fallthru
          _
        // Predicated region
        $region81: #{tpu_custom_call.1} parent=11 // pred_check
          %p524 = pneg %p432
        $region82: #{tpu_custom_call.1} parent=11 // pred_check_branch
          %526 = sbr.rel (%p524) target = $region84
        $region83: #{tpu_custom_call.1} parent=11 // pred_region
          _
        $region84: #{tpu_custom_call.1} parent=11 // pred_fallthru
          _
      $region12: #{tpu_custom_call.1} parent=5 // pred_fallthru
        _
      %p527 = scmp.lt.s32.totalorder %s28, 2
      // Predicated region
      $region85: #{tpu_custom_call.1} parent=5 // pred_check
        %p528 = pneg %p527
      $region86: #{tpu_custom_call.1} parent=5 // pred_check_branch
        %530 = sbr.rel (%p528) target = $region88
      $region87: #{tpu_custom_call.1} parent=5 // pred_region
        // Predicated region
        $region89: #{tpu_custom_call.1} parent=87 // pred_check
          %p531 = pneg %p48
        $region90: #{tpu_custom_call.1} parent=87 // pred_check_branch
          %533 = sbr.rel (%p531) target = $region92
        $region91: #{tpu_custom_call.1} parent=87 // pred_region
          %p534 = scmp.lt.s32.totalorder %s28, 1
          %s535 = scalar_select %p534, %s28, 1
          %s536 = smul.addr %s535, 2
          %s537 = smul.addr %s536, 8
          %s538 = scalar_lea.vmem %s0, %s537
        $region92: #{tpu_custom_call.1} parent=87 // pred_fallthru
          _
      $region88: #{tpu_custom_call.1} parent=5 // pred_fallthru
        _
      %p539 = scmp.le.s32.totalorder 1, %s28
      %p540 = scmp.lt.s32.totalorder %s28, 3
      %p541 = pnand %p539, %p540
      %p542 = pneg %p541
      // Predicated region
      $region93: #{tpu_custom_call.1} parent=5 // pred_check
        _
      $region94: #{tpu_custom_call.1} parent=5 // pred_check_branch
        %544 = sbr.rel (%p541) target = $region96
      $region95: #{tpu_custom_call.1} parent=5 // pred_region
        %s545 = ssub.s32 %s28, 1
        %p546 = scmp.lt.s32.totalorder %s33, 1
        %s547 = scalar_select %p546, %s33, 1
        %s548 = smul.addr %s547, 2
        %s549 = smul.addr %s548, 8
        %s550 = scalar_lea.vmem %s0, %s549
        %p551 = pneg %p54
        %p552 = pneg %p51
        %p553 = pneg %p75
        %p554 = pneg %p72
        %p555 = pneg %p96
        %p556 = pneg %p93
        %p557 = pneg %p117
        %p558 = pneg %p114
        %p559 = pneg %p138
        %p560 = pneg %p135
        %p561 = pneg %p159
        %p562 = pneg %p156
        %p563 = pneg %p180
        %p564 = pneg %p177
        %p565 = pneg %p201
        %p566 = pneg %p198
        %p567 = pneg %p222
        %p568 = pneg %p219
        %p569 = pneg %p243
        %p570 = pneg %p240
        %p571 = pneg %p264
        %p572 = pneg %p261
        %p573 = pneg %p285
        %p574 = pneg %p282
        %p575 = pneg %p306
        %p576 = pneg %p303
        %p577 = pneg %p327
        %p578 = pneg %p324
        %p579 = pneg %p348
        %p580 = pneg %p345
        %p581 = pneg %p369
        %p582 = pneg %p366
        %p583 = pneg %p390
        %p584 = pneg %p387
        %p585 = pneg %p411
        %p586 = pneg %p408
        %p587 = pneg %p432
        %p588 = pneg %p429
        %p589 = pneg %p458
        %p590 = pneg %p455
        %s591 = sand.u32 %s445, 1
        %s592 = scalar_lea.sflag [#allocation3], %s591
        %s593 = sand.u32 %s445, 1
        %s594 = smul.addr %s593, 4
        %s595 = scalar_lea.vmem [#allocation2], %s594
        %p596 = scmp.lt.s32.totalorder %s33, 1
        %s597 = scalar_select %p596, %s33, 1
        %s598 = smul.addr %s597, 2
        %s599 = smul.addr %s598, 8
        %s600 = scalar_lea.vmem %s0, %s599
        %v601 = vld [vmem:[%s1] sm:$0xff]
        %v602 = vld [vmem:[%s1 + $0x8] sm:$0xff]
        %v603 = vld [vmem:[%s1 + $0x10] sm:$0xff]
        %v604 = vld [vmem:[%s1 + $0x18] sm:$0xff]
        %v605 = vld [vmem:[%s2] sm:$0xff]
        %v606 = vld [vmem:[%s2 + $0x8] sm:$0xff]
        %v607 = vld [vmem:[%s2 + $0x10] sm:$0xff]
        %v608 = vld [vmem:[%s2 + $0x18] sm:$0xff]
        %v609 = vld [vmem:[%s3] sm:$0xff]
        %v610 = vld [vmem:[%s3 + $0x8] sm:$0xff]
        %v611 = vld [vmem:[%s3 + $0x10] sm:$0xff]
        %v612 = vld [vmem:[%s3 + $0x18] sm:$0xff]
        %v613 = vld [vmem:[%s4] sm:$0xff]
        %v614 = vld [vmem:[%s4 + $0x8] sm:$0xff]
        %v615 = vld [vmem:[%s4 + $0x10] sm:$0xff]
        %v616 = vld [vmem:[%s4 + $0x18] sm:$0xff]
        %v617 = vld [vmem:[%s5] sm:$0xff]
        %v618 = vld [vmem:[%s5 + $0x8] sm:$0xff]
        %v619 = vld [vmem:[%s5 + $0x10] sm:$0xff]
        %v620 = vld [vmem:[%s5 + $0x18] sm:$0xff]
        %v621 = vld [vmem:[%s6] sm:$0xff]
        %v622 = vld [vmem:[%s6 + $0x8] sm:$0xff]
        %v623 = vld [vmem:[%s6 + $0x10] sm:$0xff]
        %v624 = vld [vmem:[%s6 + $0x18] sm:$0xff]
        %v625 = vld [vmem:[%s7] sm:$0xff]
        %v626 = vld [vmem:[%s7 + $0x8] sm:$0xff]
        %v627 = vld [vmem:[%s8] sm:$0xff]
        %v628 = vld [vmem:[%s8 + $0x8] sm:$0xff]
        %v629 = vld [vmem:[%s9] sm:$0xff]
        %v630 = vld [vmem:[%s9 + $0x8] sm:$0xff]
        %v631 = vld [vmem:[%s10] sm:$0xff]
        %v632 = vld [vmem:[%s10 + $0x8] sm:$0xff]
        %v633 = vld [vmem:[%s11] sm:$0xff]
        %v634 = vld [vmem:[%s11 + $0x8] sm:$0xff]
        %v635 = vld [vmem:[%s12] sm:$0xff]
        %v636 = vld [vmem:[%s12 + $0x8] sm:$0xff]
        %v637 = vld [vmem:[%s13] sm:$0xff]
        %v638 = vld [vmem:[%s13 + $0x8] sm:$0xff]
        %v639 = vld [vmem:[%s14] sm:$0xff]
        %v640 = vld [vmem:[%s14 + $0x8] sm:$0xff]
        %v641 = vld [vmem:[%s15] sm:$0xff]
        %v642 = vld [vmem:[%s15 + $0x8] sm:$0xff]
        %v643 = vld [vmem:[%s16] sm:$0xff]
        %v644 = vld [vmem:[%s16 + $0x8] sm:$0xff]
        %v645 = vld [vmem:[%s17] sm:$0xf]
        %v646 = vld [vmem:[%s18] sm:$0xf]
        %v647 = vld [vmem:[%s600] sm:$0xff]
        %v648 = vld [vmem:[%s600 + $0x8] sm:$0xff]
        %650 = vset.pattern.permute.xlu0 0
        %651 = vperm.xlu0 %650, %v605
        %v652 = vpop.permute.xlu0 %651
        %655 = vset.pattern.permute.xlu0 0
        %656 = vperm.xlu0 %655, %v606
        %v657 = vpop.permute.xlu0 %656
        %660 = vset.pattern.permute.xlu0 0
        %661 = vperm.xlu0 %660, %v607
        %v662 = vpop.permute.xlu0 %661
        %665 = vset.pattern.permute.xlu0 0
        %666 = vperm.xlu0 %665, %v608
        %v667 = vpop.permute.xlu0 %666
        %vm669 = vcmask 130048
        %v671 = vsel %vm669, %v601, 0
        %v674 = vsel %vm669, %v602, 0
        %v677 = vsel %vm669, %v603, 0
        %v680 = vsel %vm669, %v604, 0
        %682 = vmatprep.subr.mxu0 0.0
        %683 = vmatpush1.msra.mxu0 %v647
        %684 = vmatprep.subr.mxu0 0.0
        %685 = vmatpush1.msra.mxu0 %v648
        %686 = vmatprep.subr.mxu0 0.0
        %687 = vmatpush1.msra.mxu0 0.0
        %688 = vmatprep.subr.mxu0 0.0
        %689 = vmatpush1.msra.mxu0 0.0
        %690 = vmatprep.subr.mxu0 0.0
        %691 = vmatpush1.msra.mxu0 0.0
        %692 = vmatprep.subr.mxu0 0.0
        %693 = vmatpush1.msra.mxu0 0.0
        %694 = vmatprep.subr.mxu0 0.0
        %695 = vmatpush1.msra.mxu0 0.0
        %696 = vmatprep.subr.mxu0 0.0
        %697 = vmatpush1.msra.mxu0 0.0
        %698 = vmatprep.subr.mxu0 0.0
        %699 = vmatpush1.msra.mxu0 0.0
        %700 = vmatprep.subr.mxu0 0.0
        %701 = vmatpush1.msra.mxu0 0.0
        %702 = vmatprep.subr.mxu0 0.0
        %703 = vmatpush1.msra.mxu0 0.0
        %704 = vmatprep.subr.mxu0 0.0
        %705 = vmatpush1.msra.mxu0 0.0
        %706 = vmatprep.subr.mxu0 0.0
        %707 = vmatpush1.msra.mxu0 0.0
        %708 = vmatprep.subr.mxu0 0.0
        %709 = vmatpush1.msra.mxu0 0.0
        %710 = vmatprep.subr.mxu0 0.0
        %711 = vmatpush1.msra.mxu0 0.0
        %712 = vmatprep.subr.mxu0 0.0
        %713 = vmatpush1.msra.mxu0 0.0
        %714 = vmatprep.subr.mxu0 0.0
        %715 = vmatpush1.msra.mxu0 0.0
        %716 = vmatprep.subr.mxu0 0.0
        %717 = vmatpush1.msra.mxu0 0.0
        %718 = vmatprep.subr.mxu0 0.0
        %719 = vmatpush1.msra.mxu0 0.0
        %720 = vmatprep.subr.mxu0 0.0
        %721 = vmatpush1.msra.mxu0 0.0
        %722 = vmatprep.subr.mxu0 0.0
        %723 = vmatpush1.msra.mxu0 0.0
        %724 = vmatprep.subr.mxu0 0.0
        %725 = vmatpush1.msra.mxu0 0.0
        %726 = vmatprep.subr.mxu0 0.0
        %727 = vmatpush1.msra.mxu0 0.0
        %728 = vmatprep.subr.mxu0 0.0
        %729 = vmatpush1.msra.mxu0 0.0
        %730 = vmatprep.subr.mxu0 0.0
        %731 = vmatpush1.msra.mxu0 0.0
        %732 = vmatprep.subr.mxu0 0.0
        %733 = vmatpush1.msra.mxu0 0.0
        %734 = vmatprep.subr.mxu0 0.0
        %735 = vmatpush1.msra.mxu0 0.0
        %736 = vmatprep.subr.mxu0 0.0
        %737 = vmatpush1.msra.mxu0 0.0
        %738 = vmatprep.subr.mxu0 0.0
        %739 = vmatpush1.msra.mxu0 0.0
        %740 = vmatprep.subr.mxu0 0.0
        %741 = vmatpush1.msra.mxu0 0.0
        %742 = vmatprep.subr.mxu0 0.0
        %743 = vmatpush1.msra.mxu0 0.0
        %744 = vmatprep.subr.mxu0 0.0
        %745 = vmatpush1.msra.mxu0 0.0
        %746 = vmatprep.mubr.f32.mxu0 0.0
        %747 = vmatmul.mubr.f32.gmra.mrb[0].mxu0 %v671
        %v748 = vpop.f32.mrb[0].mxu0
        %v749 = vadd.f32 %v652, %v748
        %v750 = vpop.f32.mrb[0].mxu0
        %751 = vmatprep.mubr.f32.mxu0 0.0
        %752 = vmatmul.mubr.f32.gmra.mrb[0].mxu0 %v674
        %v753 = vpop.f32.mrb[0].mxu0
        %v754 = vadd.f32 %v657, %v753
        %v755 = vpop.f32.mrb[0].mxu0
        %756 = vmatprep.mubr.f32.mxu0 0.0
        %757 = vmatmul.mubr.f32.gmra.mrb[0].mxu0 %v677
        %v758 = vpop.f32.mrb[0].mxu0
        %v759 = vadd.f32 %v662, %v758
        %v760 = vpop.f32.mrb[0].mxu0
        %761 = vmatprep.mubr.f32.mxu0 0.0
        %762 = vmatmul.mubr.f32.gmra.mrb[0].mxu0 %v680
        %v763 = vpop.f32.mrb[0].mxu0
        %v764 = vadd.f32 %v667, %v763
        %v765 = vpop.f32.mrb[0].mxu0
        %766 = vdwg.mxu0
        %vm767 = vcmp.gt.f32.partialorder %v749, 0.0
        %vm768 = vcmp.gt.f32.partialorder %v754, 0.0
        %vm769 = vcmp.gt.f32.partialorder %v759, 0.0
        %vm770 = vcmp.gt.f32.partialorder %v764, 0.0
        %v771 = vmin.f32 %v749, 0.0
        %v772 = vmin.f32 %v754, 0.0
        %v773 = vmin.f32 %v759, 0.0
        %v774 = vmin.f32 %v764, 0.0
        %v775 = vmul.f32 %v771, 1.442695
        %v776 = vpow.pop %v775
        %v777 = vmul.f32 %v772, 1.442695
        %v778 = vpow.pop %v777
        %v779 = vmul.f32 %v773, 1.442695
        %v780 = vpow.pop %v779
        %v781 = vmul.f32 %v774, 1.442695
        %v782 = vpow.pop %v781
        %v783 = vsub.f32 %v776, 1.0
        %v784 = vsub.f32 %v778, 1.0
        %v785 = vsub.f32 %v780, 1.0
        %v786 = vsub.f32 %v782, 1.0
        %v787 = vsel %vm767, %v749, %v783
        %v788 = vsel %vm768, %v754, %v784
        %v789 = vsel %vm769, %v759, %v785
        %v790 = vsel %vm770, %v764, %v786
        %792 = vset.pattern.permute.xlu0 0
        %793 = vperm.xlu0 %792, %v613
        %v794 = vpop.permute.xlu0 %793
        %797 = vset.pattern.permute.xlu0 0
        %798 = vperm.xlu0 %797, %v614
        %v799 = vpop.permute.xlu0 %798
        %802 = vset.pattern.permute.xlu0 0
        %803 = vperm.xlu0 %802, %v615
        %v804 = vpop.permute.xlu0 %803
        %807 = vset.pattern.permute.xlu0 0
        %808 = vperm.xlu0 %807, %v616
        %v809 = vpop.permute.xlu0 %808
        %vm811 = vcmask 261120
        %v813 = vsel %vm811, %v609, 0
        %v816 = vsel %vm811, %v610, 0
        %v819 = vsel %vm811, %v611, 0
        %v822 = vsel %vm811, %v612, 0
        %824 = vmatprep.subr.mxu0 0.0
        %825 = vmatpush1.msra.mxu0 %v787
        %826 = vmatprep.subr.mxu0 0.0
        %827 = vmatpush1.msra.mxu0 %v788
        %828 = vmatprep.subr.mxu0 0.0
        %829 = vmatpush1.msra.mxu0 %v789
        %830 = vmatprep.subr.mxu0 0.0
        %831 = vmatpush1.msra.mxu0 %v790
        %832 = vmatprep.subr.mxu0 0.0
        %833 = vmatpush1.msra.mxu0 0.0
        %834 = vmatprep.subr.mxu0 0.0
        %835 = vmatpush1.msra.mxu0 0.0
        %836 = vmatprep.subr.mxu0 0.0
        %837 = vmatpush1.msra.mxu0 0.0
        %838 = vmatprep.subr.mxu0 0.0
        %839 = vmatpush1.msra.mxu0 0.0
        %840 = vmatprep.subr.mxu0 0.0
        %841 = vmatpush1.msra.mxu0 0.0
        %842 = vmatprep.subr.mxu0 0.0
        %843 = vmatpush1.msra.mxu0 0.0
        %844 = vmatprep.subr.mxu0 0.0
        %845 = vmatpush1.msra.mxu0 0.0
        %846 = vmatprep.subr.mxu0 0.0
        %847 = vmatpush1.msra.mxu0 0.0
        %848 = vmatprep.subr.mxu0 0.0
        %849 = vmatpush1.msra.mxu0 0.0
        %850 = vmatprep.subr.mxu0 0.0
        %851 = vmatpush1.msra.mxu0 0.0
        %852 = vmatprep.subr.mxu0 0.0
        %853 = vmatpush1.msra.mxu0 0.0
        %854 = vmatprep.subr.mxu0 0.0
        %855 = vmatpush1.msra.mxu0 0.0
        %856 = vmatprep.subr.mxu0 0.0
        %857 = vmatpush1.msra.mxu0 0.0
        %858 = vmatprep.subr.mxu0 0.0
        %859 = vmatpush1.msra.mxu0 0.0
        %860 = vmatprep.subr.mxu0 0.0
        %861 = vmatpush1.msra.mxu0 0.0
        %862 = vmatprep.subr.mxu0 0.0
        %863 = vmatpush1.msra.mxu0 0.0
        %864 = vmatprep.subr.mxu0 0.0
        %865 = vmatpush1.msra.mxu0 0.0
        %866 = vmatprep.subr.mxu0 0.0
        %867 = vmatpush1.msra.mxu0 0.0
        %868 = vmatprep.subr.mxu0 0.0
        %869 = vmatpush1.msra.mxu0 0.0
        %870 = vmatprep.subr.mxu0 0.0
        %871 = vmatpush1.msra.mxu0 0.0
        %872 = vmatprep.subr.mxu0 0.0
        %873 = vmatpush1.msra.mxu0 0.0
        %874 = vmatprep.subr.mxu0 0.0
        %875 = vmatpush1.msra.mxu0 0.0
        %876 = vmatprep.subr.mxu0 0.0
        %877 = vmatpush1.msra.mxu0 0.0
        %878 = vmatprep.subr.mxu0 0.0
        %879 = vmatpush1.msra.mxu0 0.0
        %880 = vmatprep.subr.mxu0 0.0
        %881 = vmatpush1.msra.mxu0 0.0
        %882 = vmatprep.subr.mxu0 0.0
        %883 = vmatpush1.msra.mxu0 0.0
        %884 = vmatprep.subr.mxu0 0.0
        %885 = vmatpush1.msra.mxu0 0.0
        %886 = vmatprep.subr.mxu0 0.0
        %887 = vmatpush1.msra.mxu0 0.0
        %888 = vmatprep.mubr.f32.mxu0 0.0
        %889 = vmatmul.mubr.f32.gmra.mrb[0].mxu0 %v813
        %v890 = vpop.f32.mrb[0].mxu0
        %v891 = vadd.f32 %v794, %v890
        %v892 = vpop.f32.mrb[0].mxu0
        %893 = vmatprep.mubr.f32.mxu0 0.0
        %894 = vmatmul.mubr.f32.gmra.mrb[0].mxu0 %v816
        %v895 = vpop.f32.mrb[0].mxu0
        %v896 = vadd.f32 %v799, %v895
        %v897 = vpop.f32.mrb[0].mxu0
        %898 = vmatprep.mubr.f32.mxu0 0.0
        %899 = vmatmul.mubr.f32.gmra.mrb[0].mxu0 %v819
        %v900 = vpop.f32.mrb[0].mxu0
        %v901 = vadd.f32 %v804, %v900
        %v902 = vpop.f32.mrb[0].mxu0
        %903 = vmatprep.mubr.f32.mxu0 0.0
        %904 = vmatmul.mubr.f32.gmra.mrb[0].mxu0 %v822
        %v905 = vpop.f32.mrb[0].mxu0
        %v906 = vadd.f32 %v809, %v905
        %v907 = vpop.f32.mrb[0].mxu0
        %908 = vdwg.mxu0
        %vm909 = vcmp.gt.f32.partialorder %v891, 0.0
        %vm910 = vcmp.gt.f32.partialorder %v896, 0.0
        %vm911 = vcmp.gt.f32.partialorder %v901, 0.0
        %vm912 = vcmp.gt.f32.partialorder %v906, 0.0
        %v913 = vmin.f32 %v891, 0.0
        %v914 = vmin.f32 %v896, 0.0
        %v915 = vmin.f32 %v901, 0.0
        %v916 = vmin.f32 %v906, 0.0
        %v917 = vmul.f32 %v913, 1.442695
        %v918 = vpow.pop %v917
        %v919 = vmul.f32 %v914, 1.442695
        %v920 = vpow.pop %v919
        %v921 = vmul.f32 %v915, 1.442695
        %v922 = vpow.pop %v921
        %v923 = vmul.f32 %v916, 1.442695
        %v924 = vpow.pop %v923
        %v925 = vsub.f32 %v918, 1.0
        %v926 = vsub.f32 %v920, 1.0
        %v927 = vsub.f32 %v922, 1.0
        %v928 = vsub.f32 %v924, 1.0
        %v929 = vsel %vm909, %v891, %v925
        %v930 = vsel %vm910, %v896, %v926
        %v931 = vsel %vm911, %v901, %v927
        %v932 = vsel %vm912, %v906, %v928
        %934 = vset.pattern.permute.xlu0 0
        %935 = vperm.xlu0 %934, %v621
        %v936 = vpop.permute.xlu0 %935
        %939 = vset.pattern.permute.xlu0 0
        %940 = vperm.xlu0 %939, %v622
        %v941 = vpop.permute.xlu0 %940
        %944 = vset.pattern.permute.xlu0 0
        %945 = vperm.xlu0 %944, %v623
        %v946 = vpop.permute.xlu0 %945
        %949 = vset.pattern.permute.xlu0 0
        %950 = vperm.xlu0 %949, %v624
        %v951 = vpop.permute.xlu0 %950
        %v954 = vsel %vm811, %v617, 0
        %v957 = vsel %vm811, %v618, 0
        %v960 = vsel %vm811, %v619, 0
        %v963 = vsel %vm811, %v620, 0
        %965 = vmatprep.subr.mxu0 0.0
        %966 = vmatpush1.msra.mxu0 %v929
        %967 = vmatprep.subr.mxu0 0.0
        %968 = vmatpush1.msra.mxu0 %v930
        %969 = vmatprep.subr.mxu0 0.0
        %970 = vmatpush1.msra.mxu0 %v931
        %971 = vmatprep.subr.mxu0 0.0
        %972 = vmatpush1.msra.mxu0 %v932
        %973 = vmatprep.subr.mxu0 0.0
        %974 = vmatpush1.msra.mxu0 0.0
        %975 = vmatprep.subr.mxu0 0.0
        %976 = vmatpush1.msra.mxu0 0.0
        %977 = vmatprep.subr.mxu0 0.0
        %978 = vmatpush1.msra.mxu0 0.0
        %979 = vmatprep.subr.mxu0 0.0
        %980 = vmatpush1.msra.mxu0 0.0
        %981 = vmatprep.subr.mxu0 0.0
        %982 = vmatpush1.msra.mxu0 0.0
        %983 = vmatprep.subr.mxu0 0.0
        %984 = vmatpush1.msra.mxu0 0.0
        %985 = vmatprep.subr.mxu0 0.0
        %986 = vmatpush1.msra.mxu0 0.0
        %987 = vmatprep.subr.mxu0 0.0
        %988 = vmatpush1.msra.mxu0 0.0
        %989 = vmatprep.subr.mxu0 0.0
        %990 = vmatpush1.msra.mxu0 0.0
        %991 = vmatprep.subr.mxu0 0.0
        %992 = vmatpush1.msra.mxu0 0.0
        %993 = vmatprep.subr.mxu0 0.0
        %994 = vmatpush1.msra.mxu0 0.0
        %995 = vmatprep.subr.mxu0 0.0
        %996 = vmatpush1.msra.mxu0 0.0
        %997 = vmatprep.subr.mxu0 0.0
        %998 = vmatpush1.msra.mxu0 0.0
        %999 = vmatprep.subr.mxu0 0.0
        %1000 = vmatpush1.msra.mxu0 0.0
        %1001 = vmatprep.subr.mxu0 0.0
        %1002 = vmatpush1.msra.mxu0 0.0
        %1003 = vmatprep.subr.mxu0 0.0
        %1004 = vmatpush1.msra.mxu0 0.0
        %1005 = vmatprep.subr.mxu0 0.0
        %1006 = vmatpush1.msra.mxu0 0.0
        %1007 = vmatprep.subr.mxu0 0.0
        %1008 = vmatpush1.msra.mxu0 0.0
        %1009 = vmatprep.subr.mxu0 0.0
        %1010 = vmatpush1.msra.mxu0 0.0
        %1011 = vmatprep.subr.mxu0 0.0
        %1012 = vmatpush1.msra.mxu0 0.0
        %1013 = vmatprep.subr.mxu0 0.0
        %1014 = vmatpush1.msra.mxu0 0.0
        %1015 = vmatprep.subr.mxu0 0.0
        %1016 = vmatpush1.msra.mxu0 0.0
        %1017 = vmatprep.subr.mxu0 0.0
        %1018 = vmatpush1.msra.mxu0 0.0
        %1019 = vmatprep.subr.mxu0 0.0
        %1020 = vmatpush1.msra.mxu0 0.0
        %1021 = vmatprep.subr.mxu0 0.0
        %1022 = vmatpush1.msra.mxu0 0.0
        %1023 = vmatprep.subr.mxu0 0.0
        %1024 = vmatpush1.msra.mxu0 0.0
        %1025 = vmatprep.subr.mxu0 0.0
        %1026 = vmatpush1.msra.mxu0 0.0
        %1027 = vmatprep.subr.mxu0 0.0
        %1028 = vmatpush1.msra.mxu0 0.0
        %1029 = vmatprep.mubr.f32.mxu0 0.0
        %1030 = vmatmul.mubr.f32.gmra.mrb[0].mxu0 %v954
        %v1031 = vpop.f32.mrb[0].mxu0
        %v1032 = vadd.f32 %v936, %v1031
        %v1033 = vpop.f32.mrb[0].mxu0
        %1034 = vmatprep.mubr.f32.mxu0 0.0
        %1035 = vmatmul.mubr.f32.gmra.mrb[0].mxu0 %v957
        %v1036 = vpop.f32.mrb[0].mxu0
        %v1037 = vadd.f32 %v941, %v1036
        %v1038 = vpop.f32.mrb[0].mxu0
        %1039 = vmatprep.mubr.f32.mxu0 0.0
        %1040 = vmatmul.mubr.f32.gmra.mrb[0].mxu0 %v960
        %v1041 = vpop.f32.mrb[0].mxu0
        %v1042 = vadd.f32 %v946, %v1041
        %v1043 = vpop.f32.mrb[0].mxu0
        %1044 = vmatprep.mubr.f32.mxu0 0.0
        %1045 = vmatmul.mubr.f32.gmra.mrb[0].mxu0 %v963
        %v1046 = vpop.f32.mrb[0].mxu0
        %v1047 = vadd.f32 %v951, %v1046
        %v1048 = vpop.f32.mrb[0].mxu0
        %1049 = vdwg.mxu0
        %1051 = vrot.lane.b32.xlu0 %v1037, 4
        %v1052 = vpop.permute.xlu0 %1051
        %1055 = vrot.lane.b32.xlu0 %v1042, 8
        %v1056 = vpop.permute.xlu0 %1055
        %1059 = vrot.lane.b32.xlu0 %v1047, 12
        %v1060 = vpop.permute.xlu0 %1059
        %vm1062 = vcmask 31744
        %v1063 = vsel %vm1062, %v1032, %v1052
        %vm1064 = vcmask 64512
        %v1065 = vsel %vm1064, %v1063, %v1056
        %vm1066 = vcmask 97280
        %v1067 = vsel %vm1066, %v1065, %v1060
        %1069 = vrot.lane.b32.xlu0 %v1067, 8
        %v1070 = vpop.permute.xlu0 %1069
        %v1072 = vsel %vm1064, 0.0, %v1070
        %1073 = vrot.lane.b32.xlu0 %v1067, 4
        %v1074 = vpop.permute.xlu0 %1073
        %v1076 = vsel %vm1062, 0.0, %v1074
        %1077 = vrot.lane.b32.xlu0 %v1067, 124
        %v1078 = vpop.permute.xlu0 %1077
        %v1080 = vsel %vm1066, %v1078, 0.0
        %1081 = vrot.lane.b32.xlu0 %v1067, 120
        %v1082 = vpop.permute.xlu0 %1081
        %v1084 = vsel %vm1064, %v1082, 0.0
        %1086 = vset.pattern.permute.xlu0 0
        %1087 = vperm.xlu0 %1086, %v627
        %v1088 = vpop.permute.xlu0 %1087
        %1091 = vset.pattern.permute.xlu0 0
        %1092 = vperm.xlu0 %1091, %v628
        %v1093 = vpop.permute.xlu0 %1092
        %vm1095 = vcmask 326656
        %v1097 = vsel %vm1095, %v625, 0
        %v1100 = vsel %vm1095, %v626, 0
        %1102 = vmatprep.subr.mxu0 0.0
        %1103 = vmatpush1.msra.mxu0 %v1072
        %1104 = vmatprep.subr.mxu0 0.0
        %1105 = vmatpush1.msra.mxu0 %v1076
        %1106 = vmatprep.subr.mxu0 0.0
        %1107 = vmatpush1.msra.mxu0 %v1067
        %1108 = vmatprep.subr.mxu0 0.0
        %1109 = vmatpush1.msra.mxu0 %v1080
        %1110 = vmatprep.subr.mxu0 0.0
        %1111 = vmatpush1.msra.mxu0 %v1084
        %1112 = vmatprep.subr.mxu0 0.0
        %1113 = vmatpush1.msra.mxu0 0.0
        %1114 = vmatprep.subr.mxu0 0.0
        %1115 = vmatpush1.msra.mxu0 0.0
        %1116 = vmatprep.subr.mxu0 0.0
        %1117 = vmatpush1.msra.mxu0 0.0
        %1118 = vmatprep.subr.mxu0 0.0
        %1119 = vmatpush1.msra.mxu0 0.0
        %1120 = vmatprep.subr.mxu0 0.0
        %1121 = vmatpush1.msra.mxu0 0.0
        %1122 = vmatprep.subr.mxu0 0.0
        %1123 = vmatpush1.msra.mxu0 0.0
        %1124 = vmatprep.subr.mxu0 0.0
        %1125 = vmatpush1.msra.mxu0 0.0
        %1126 = vmatprep.subr.mxu0 0.0
        %1127 = vmatpush1.msra.mxu0 0.0
        %1128 = vmatprep.subr.mxu0 0.0
        %1129 = vmatpush1.msra.mxu0 0.0
        %1130 = vmatprep.subr.mxu0 0.0
        %1131 = vmatpush1.msra.mxu0 0.0
        %1132 = vmatprep.subr.mxu0 0.0
        %1133 = vmatpush1.msra.mxu0 0.0
        %1134 = vmatprep.subr.mxu0 0.0
        %1135 = vmatpush1.msra.mxu0 0.0
        %1136 = vmatprep.subr.mxu0 0.0
        %1137 = vmatpush1.msra.mxu0 0.0
        %1138 = vmatprep.subr.mxu0 0.0
        %1139 = vmatpush1.msra.mxu0 0.0
        %1140 = vmatprep.subr.mxu0 0.0
        %1141 = vmatpush1.msra.mxu0 0.0
        %1142 = vmatprep.subr.mxu0 0.0
        %1143 = vmatpush1.msra.mxu0 0.0
        %1144 = vmatprep.subr.mxu0 0.0
        %1145 = vmatpush1.msra.mxu0 0.0
        %1146 = vmatprep.subr.mxu0 0.0
        %1147 = vmatpush1.msra.mxu0 0.0
        %1148 = vmatprep.subr.mxu0 0.0
        %1149 = vmatpush1.msra.mxu0 0.0
        %1150 = vmatprep.subr.mxu0 0.0
        %1151 = vmatpush1.msra.mxu0 0.0
        %1152 = vmatprep.subr.mxu0 0.0
        %1153 = vmatpush1.msra.mxu0 0.0
        %1154 = vmatprep.subr.mxu0 0.0
        %1155 = vmatpush1.msra.mxu0 0.0
        %1156 = vmatprep.subr.mxu0 0.0
        %1157 = vmatpush1.msra.mxu0 0.0
        %1158 = vmatprep.subr.mxu0 0.0
        %1159 = vmatpush1.msra.mxu0 0.0
        %1160 = vmatprep.subr.mxu0 0.0
        %1161 = vmatpush1.msra.mxu0 0.0
        %1162 = vmatprep.subr.mxu0 0.0
        %1163 = vmatpush1.msra.mxu0 0.0
        %1164 = vmatprep.subr.mxu0 0.0
        %1165 = vmatpush1.msra.mxu0 0.0
        %1166 = vmatprep.mubr.f32.mxu0 0.0
        %1167 = vmatmul.mubr.f32.gmra.mrb[0].mxu0 %v1097
        %v1168 = vpop.f32.mrb[0].mxu0
        %v1169 = vadd.f32 %v1088, %v1168
        %v1170 = vpop.f32.mrb[0].mxu0
        %1171 = vmatprep.mubr.f32.mxu0 0.0
        %1172 = vmatmul.mubr.f32.gmra.mrb[0].mxu0 %v1100
        %v1173 = vpop.f32.mrb[0].mxu0
        %v1174 = vadd.f32 %v1093, %v1173
        %v1175 = vpop.f32.mrb[0].mxu0
        %1176 = vdwg.mxu0
        %vm1177 = vcmp.gt.f32.partialorder %v1169, 0.0
        %vm1178 = vcmp.gt.f32.partialorder %v1174, 0.0
        %v1179 = vmin.f32 %v1169, 0.0
        %v1180 = vmin.f32 %v1174, 0.0
        %v1181 = vmul.f32 %v1179, 1.442695
        %v1182 = vpow.pop %v1181
        %v1183 = vmul.f32 %v1180, 1.442695
        %v1184 = vpow.pop %v1183
        %v1185 = vsub.f32 %v1182, 1.0
        %v1186 = vsub.f32 %v1184, 1.0
        %v1187 = vsel %vm1177, %v1169, %v1185
        %v1188 = vsel %vm1178, %v1174, %v1186
        %1191 = vrot.lane.b32.xlu0 %v1187, 4
        %v1192 = vpop.permute.xlu0 %1191
        %1193 = vrot.lane.b32.xlu0 %v1188, 4
        %v1194 = vpop.permute.xlu0 %1193
        %1197 = vrot.lane.b32.xlu0 %v1187, 8
        %v1198 = vpop.permute.xlu0 %1197
        %1199 = vrot.lane.b32.xlu0 %v1188, 8
        %v1200 = vpop.permute.xlu0 %1199
        %1203 = vrot.lane.b32.xlu0 %v1187, 12
        %v1204 = vpop.permute.xlu0 %1203
        %1205 = vrot.lane.b32.xlu0 %v1188, 12
        %v1206 = vpop.permute.xlu0 %1205
        %1209 = vrot.lane.b32.xlu0 %v1187, 16
        %v1210 = vpop.permute.xlu0 %1209
        %1211 = vrot.lane.b32.xlu0 %v1188, 16
        %v1212 = vpop.permute.xlu0 %1211
        %v1215 = vsel %vm1062, %v1187, %v1192
        %v1216 = vsel %vm1062, %v1188, %v1194
        %v1217 = vsel %vm1064, %v1215, %v1192
        %v1218 = vsel %vm1064, %v1216, %v1194
        %v1219 = vsel %vm1066, %v1217, %v1198
        %v1220 = vsel %vm1066, %v1218, %v1200
        %v1221 = vsel %vm669, %v1219, %v1198
        %v1222 = vsel %vm669, %v1220, %v1200
        %vm1223 = vcmask 162816
        %v1224 = vsel %vm1223, %v1221, %v1204
        %v1225 = vsel %vm1223, %v1222, %v1206
        %vm1226 = vcmask 195584
        %v1227 = vsel %vm1226, %v1224, %v1204
        %v1228 = vsel %vm1226, %v1225, %v1206
        %vm1229 = vcmask 228352
        %v1230 = vsel %vm1229, %v1227, %v1210
        %v1231 = vsel %vm1229, %v1228, %v1212
        %1234 = vrot.lane.b32.xlu0 %v1230, 8
        %v1235 = vpop.permute.xlu0 %1234
        %1236 = vrot.lane.b32.xlu0 %v1231, 8
        %v1237 = vpop.permute.xlu0 %1236
        %v1240 = vsel %vm1064, 0.0, %v1235
        %v1241 = vsel %vm1064, 0.0, %v1237
        %1242 = vrot.lane.b32.xlu0 %v1230, 4
        %v1243 = vpop.permute.xlu0 %1242
        %1244 = vrot.lane.b32.xlu0 %v1231, 4
        %v1245 = vpop.permute.xlu0 %1244
        %v1248 = vsel %vm1062, 0.0, %v1243
        %v1249 = vsel %vm1062, 0.0, %v1245
        %1250 = vrot.lane.b32.xlu0 %v1230, 124
        %v1251 = vpop.permute.xlu0 %1250
        %1252 = vrot.lane.b32.xlu0 %v1231, 124
        %v1253 = vpop.permute.xlu0 %1252
        %v1256 = vsel %vm1229, %v1251, 0.0
        %v1257 = vsel %vm1229, %v1253, 0.0
        %1258 = vrot.lane.b32.xlu0 %v1230, 120
        %v1259 = vpop.permute.xlu0 %1258
        %1260 = vrot.lane.b32.xlu0 %v1231, 120
        %v1261 = vpop.permute.xlu0 %1260
        %v1264 = vsel %vm1226, %v1259, 0.0
        %v1265 = vsel %vm1226, %v1261, 0.0
        %1267 = vset.pattern.permute.xlu0 0
        %1268 = vperm.xlu0 %1267, %v631
        %v1269 = vpop.permute.xlu0 %1268
        %1272 = vset.pattern.permute.xlu0 0
        %1273 = vperm.xlu0 %1272, %v632
        %v1274 = vpop.permute.xlu0 %1273
        %vm1276 = vcmask 654336
        %v1278 = vsel %vm1276, %v629, 0
        %v1281 = vsel %vm1276, %v630, 0
        %1283 = vmatprep.subr.mxu0 0.0
        %1284 = vmatpush1.msra.mxu0 %v1240
        %1285 = vmatprep.subr.mxu0 0.0
        %1286 = vmatpush1.msra.mxu0 %v1241
        %1287 = vmatprep.subr.mxu0 0.0
        %1288 = vmatpush1.msra.mxu0 %v1248
        %1289 = vmatprep.subr.mxu0 0.0
        %1290 = vmatpush1.msra.mxu0 %v1249
        %1291 = vmatprep.subr.mxu0 0.0
        %1292 = vmatpush1.msra.mxu0 %v1230
        %1293 = vmatprep.subr.mxu0 0.0
        %1294 = vmatpush1.msra.mxu0 %v1231
        %1295 = vmatprep.subr.mxu0 0.0
        %1296 = vmatpush1.msra.mxu0 %v1256
        %1297 = vmatprep.subr.mxu0 0.0
        %1298 = vmatpush1.msra.mxu0 %v1257
        %1299 = vmatprep.subr.mxu0 0.0
        %1300 = vmatpush1.msra.mxu0 %v1264
        %1301 = vmatprep.subr.mxu0 0.0
        %1302 = vmatpush1.msra.mxu0 %v1265
        %1303 = vmatprep.subr.mxu0 0.0
        %1304 = vmatpush1.msra.mxu0 0.0
        %1305 = vmatprep.subr.mxu0 0.0
        %1306 = vmatpush1.msra.mxu0 0.0
        %1307 = vmatprep.subr.mxu0 0.0
        %1308 = vmatpush1.msra.mxu0 0.0
        %1309 = vmatprep.subr.mxu0 0.0
        %1310 = vmatpush1.msra.mxu0 0.0
        %1311 = vmatprep.subr.mxu0 0.0
        %1312 = vmatpush1.msra.mxu0 0.0
        %1313 = vmatprep.subr.mxu0 0.0
        %1314 = vmatpush1.msra.mxu0 0.0
        %1315 = vmatprep.subr.mxu0 0.0
        %1316 = vmatpush1.msra.mxu0 0.0
        %1317 = vmatprep.subr.mxu0 0.0
        %1318 = vmatpush1.msra.mxu0 0.0
        %1319 = vmatprep.subr.mxu0 0.0
        %1320 = vmatpush1.msra.mxu0 0.0
        %1321 = vmatprep.subr.mxu0 0.0
        %1322 = vmatpush1.msra.mxu0 0.0
        %1323 = vmatprep.subr.mxu0 0.0
        %1324 = vmatpush1.msra.mxu0 0.0
        %1325 = vmatprep.subr.mxu0 0.0
        %1326 = vmatpush1.msra.mxu0 0.0
        %1327 = vmatprep.subr.mxu0 0.0
        %1328 = vmatpush1.msra.mxu0 0.0
        %1329 = vmatprep.subr.mxu0 0.0
        %1330 = vmatpush1.msra.mxu0 0.0
        %1331 = vmatprep.subr.mxu0 0.0
        %1332 = vmatpush1.msra.mxu0 0.0
        %1333 = vmatprep.subr.mxu0 0.0
        %1334 = vmatpush1.msra.mxu0 0.0
        %1335 = vmatprep.subr.mxu0 0.0
        %1336 = vmatpush1.msra.mxu0 0.0
        %1337 = vmatprep.subr.mxu0 0.0
        %1338 = vmatpush1.msra.mxu0 0.0
        %1339 = vmatprep.subr.mxu0 0.0
        %1340 = vmatpush1.msra.mxu0 0.0
        %1341 = vmatprep.subr.mxu0 0.0
        %1342 = vmatpush1.msra.mxu0 0.0
        %1343 = vmatprep.subr.mxu0 0.0
        %1344 = vmatpush1.msra.mxu0 0.0
        %1345 = vmatprep.subr.mxu0 0.0
        %1346 = vmatpush1.msra.mxu0 0.0
        %1347 = vmatprep.mubr.f32.mxu0 0.0
        %1348 = vmatmul.mubr.f32.gmra.mrb[0].mxu0 %v1278
        %v1349 = vpop.f32.mrb[0].mxu0
        %v1350 = vadd.f32 %v1269, %v1349
        %v1351 = vpop.f32.mrb[0].mxu0
        %1352 = vmatprep.mubr.f32.mxu0 0.0
        %1353 = vmatmul.mubr.f32.gmra.mrb[0].mxu0 %v1281
        %v1354 = vpop.f32.mrb[0].mxu0
        %v1355 = vadd.f32 %v1274, %v1354
        %v1356 = vpop.f32.mrb[0].mxu0
        %1357 = vdwg.mxu0
        %vm1358 = vcmp.gt.f32.partialorder %v1350, 0.0
        %vm1359 = vcmp.gt.f32.partialorder %v1355, 0.0
        %v1360 = vmin.f32 %v1350, 0.0
        %v1361 = vmin.f32 %v1355, 0.0
        %v1362 = vmul.f32 %v1360, 1.442695
        %v1363 = vpow.pop %v1362
        %v1364 = vmul.f32 %v1361, 1.442695
        %v1365 = vpow.pop %v1364
        %v1366 = vsub.f32 %v1363, 1.0
        %v1367 = vsub.f32 %v1365, 1.0
        %v1368 = vsel %vm1358, %v1350, %v1366
        %v1369 = vsel %vm1359, %v1355, %v1367
        %1372 = vrot.lane.b32.xlu0 %v1368, 4
        %v1373 = vpop.permute.xlu0 %1372
        %1374 = vrot.lane.b32.xlu0 %v1369, 4
        %v1375 = vpop.permute.xlu0 %1374
        %1378 = vrot.lane.b32.xlu0 %v1368, 8
        %v1379 = vpop.permute.xlu0 %1378
        %1380 = vrot.lane.b32.xlu0 %v1369, 8
        %v1381 = vpop.permute.xlu0 %1380
        %1384 = vrot.lane.b32.xlu0 %v1368, 12
        %v1385 = vpop.permute.xlu0 %1384
        %1386 = vrot.lane.b32.xlu0 %v1369, 12
        %v1387 = vpop.permute.xlu0 %1386
        %1390 = vrot.lane.b32.xlu0 %v1368, 16
        %v1391 = vpop.permute.xlu0 %1390
        %1392 = vrot.lane.b32.xlu0 %v1369, 16
        %v1393 = vpop.permute.xlu0 %1392
        %1396 = vrot.lane.b32.xlu0 %v1368, 20
        %v1397 = vpop.permute.xlu0 %1396
        %1398 = vrot.lane.b32.xlu0 %v1369, 20
        %v1399 = vpop.permute.xlu0 %1398
        %1402 = vrot.lane.b32.xlu0 %v1368, 24
        %v1403 = vpop.permute.xlu0 %1402
        %1404 = vrot.lane.b32.xlu0 %v1369, 24
        %v1405 = vpop.permute.xlu0 %1404
        %1408 = vrot.lane.b32.xlu0 %v1368, 28
        %v1409 = vpop.permute.xlu0 %1408
        %1410 = vrot.lane.b32.xlu0 %v1369, 28
        %v1411 = vpop.permute.xlu0 %1410
        %1414 = vrot.lane.b32.xlu0 %v1368, 32
        %v1415 = vpop.permute.xlu0 %1414
        %1416 = vrot.lane.b32.xlu0 %v1369, 32
        %v1417 = vpop.permute.xlu0 %1416
        %v1420 = vsel %vm1062, %v1368, %v1373
        %v1421 = vsel %vm1062, %v1369, %v1375
        %v1422 = vsel %vm1064, %v1420, %v1373
        %v1423 = vsel %vm1064, %v1421, %v1375
        %v1424 = vsel %vm1066, %v1422, %v1379
        %v1425 = vsel %vm1066, %v1423, %v1381
        %v1426 = vsel %vm669, %v1424, %v1379
        %v1427 = vsel %vm669, %v1425, %v1381
        %v1428 = vsel %vm1223, %v1426, %v1385
        %v1429 = vsel %vm1223, %v1427, %v1387
        %v1430 = vsel %vm1226, %v1428, %v1385
        %v1431 = vsel %vm1226, %v1429, %v1387
        %v1432 = vsel %vm1229, %v1430, %v1391
        %v1433 = vsel %vm1229, %v1431, %v1393
        %v1434 = vsel %vm811, %v1432, %v1391
        %v1435 = vsel %vm811, %v1433, %v1393
        %vm1436 = vcmask 293888
        %v1437 = vsel %vm1436, %v1434, %v1397
        %v1438 = vsel %vm1436, %v1435, %v1399
        %v1439 = vsel %vm1095, %v1437, %v1397
        %v1440 = vsel %vm1095, %v1438, %v1399
        %vm1441 = vcmask 359424
        %v1442 = vsel %vm1441, %v1439, %v1403
        %v1443 = vsel %vm1441, %v1440, %v1405
        %vm1444 = vcmask 392192
        %v1445 = vsel %vm1444, %v1442, %v1403
        %v1446 = vsel %vm1444, %v1443, %v1405
        %vm1447 = vcmask 424960
        %v1448 = vsel %vm1447, %v1445, %v1409
        %v1449 = vsel %vm1447, %v1446, %v1411
        %vm1450 = vcmask 457728
        %v1451 = vsel %vm1450, %v1448, %v1409
        %v1452 = vsel %vm1450, %v1449, %v1411
        %vm1453 = vcmask 490496
        %v1454 = vsel %vm1453, %v1451, %v1415
        %v1455 = vsel %vm1453, %v1452, %v1417
        %1458 = vrot.lane.b32.xlu0 %v1454, 8
        %v1459 = vpop.permute.xlu0 %1458
        %1460 = vrot.lane.b32.xlu0 %v1455, 8
        %v1461 = vpop.permute.xlu0 %1460
        %v1464 = vsel %vm1064, 0.0, %v1459
        %v1465 = vsel %vm1064, 0.0, %v1461
        %1466 = vrot.lane.b32.xlu0 %v1454, 4
        %v1467 = vpop.permute.xlu0 %1466
        %1468 = vrot.lane.b32.xlu0 %v1455, 4
        %v1469 = vpop.permute.xlu0 %1468
        %v1472 = vsel %vm1062, 0.0, %v1467
        %v1473 = vsel %vm1062, 0.0, %v1469
        %1474 = vrot.lane.b32.xlu0 %v1454, 124
        %v1475 = vpop.permute.xlu0 %1474
        %1476 = vrot.lane.b32.xlu0 %v1455, 124
        %v1477 = vpop.permute.xlu0 %1476
        %v1480 = vsel %vm1453, %v1475, 0.0
        %v1481 = vsel %vm1453, %v1477, 0.0
        %1482 = vrot.lane.b32.xlu0 %v1454, 120
        %v1483 = vpop.permute.xlu0 %1482
        %1484 = vrot.lane.b32.xlu0 %v1455, 120
        %v1485 = vpop.permute.xlu0 %1484
        %v1488 = vsel %vm1450, %v1483, 0.0
        %v1489 = vsel %vm1450, %v1485, 0.0
        %1491 = vset.pattern.permute.xlu0 0
        %1492 = vperm.xlu0 %1491, %v635
        %v1493 = vpop.permute.xlu0 %1492
        %1496 = vset.pattern.permute.xlu0 0
        %1497 = vperm.xlu0 %1496, %v636
        %v1498 = vpop.permute.xlu0 %1497
        %v1501 = vsel %vm1276, %v633, 0
        %v1504 = vsel %vm1276, %v634, 0
        %1506 = vmatprep.subr.mxu0 0.0
        %1507 = vmatpush1.msra.mxu0 %v1464
        %1508 = vmatprep.subr.mxu0 0.0
        %1509 = vmatpush1.msra.mxu0 %v1465
        %1510 = vmatprep.subr.mxu0 0.0
        %1511 = vmatpush1.msra.mxu0 %v1472
        %1512 = vmatprep.subr.mxu0 0.0
        %1513 = vmatpush1.msra.mxu0 %v1473
        %1514 = vmatprep.subr.mxu0 0.0
        %1515 = vmatpush1.msra.mxu0 %v1454
        %1516 = vmatprep.subr.mxu0 0.0
        %1517 = vmatpush1.msra.mxu0 %v1455
        %1518 = vmatprep.subr.mxu0 0.0
        %1519 = vmatpush1.msra.mxu0 %v1480
        %1520 = vmatprep.subr.mxu0 0.0
        %1521 = vmatpush1.msra.mxu0 %v1481
        %1522 = vmatprep.subr.mxu0 0.0
        %1523 = vmatpush1.msra.mxu0 %v1488
        %1524 = vmatprep.subr.mxu0 0.0
        %1525 = vmatpush1.msra.mxu0 %v1489
        %1526 = vmatprep.subr.mxu0 0.0
        %1527 = vmatpush1.msra.mxu0 0.0
        %1528 = vmatprep.subr.mxu0 0.0
        %1529 = vmatpush1.msra.mxu0 0.0
        %1530 = vmatprep.subr.mxu0 0.0
        %1531 = vmatpush1.msra.mxu0 0.0
        %1532 = vmatprep.subr.mxu0 0.0
        %1533 = vmatpush1.msra.mxu0 0.0
        %1534 = vmatprep.subr.mxu0 0.0
        %1535 = vmatpush1.msra.mxu0 0.0
        %1536 = vmatprep.subr.mxu0 0.0
        %1537 = vmatpush1.msra.mxu0 0.0
        %1538 = vmatprep.subr.mxu0 0.0
        %1539 = vmatpush1.msra.mxu0 0.0
        %1540 = vmatprep.subr.mxu0 0.0
        %1541 = vmatpush1.msra.mxu0 0.0
        %1542 = vmatprep.subr.mxu0 0.0
        %1543 = vmatpush1.msra.mxu0 0.0
        %1544 = vmatprep.subr.mxu0 0.0
        %1545 = vmatpush1.msra.mxu0 0.0
        %1546 = vmatprep.subr.mxu0 0.0
        %1547 = vmatpush1.msra.mxu0 0.0
        %1548 = vmatprep.subr.mxu0 0.0
        %1549 = vmatpush1.msra.mxu0 0.0
        %1550 = vmatprep.subr.mxu0 0.0
        %1551 = vmatpush1.msra.mxu0 0.0
        %1552 = vmatprep.subr.mxu0 0.0
        %1553 = vmatpush1.msra.mxu0 0.0
        %1554 = vmatprep.subr.mxu0 0.0
        %1555 = vmatpush1.msra.mxu0 0.0
        %1556 = vmatprep.subr.mxu0 0.0
        %1557 = vmatpush1.msra.mxu0 0.0
        %1558 = vmatprep.subr.mxu0 0.0
        %1559 = vmatpush1.msra.mxu0 0.0
        %1560 = vmatprep.subr.mxu0 0.0
        %1561 = vmatpush1.msra.mxu0 0.0
        %1562 = vmatprep.subr.mxu0 0.0
        %1563 = vmatpush1.msra.mxu0 0.0
        %1564 = vmatprep.subr.mxu0 0.0
        %1565 = vmatpush1.msra.mxu0 0.0
        %1566 = vmatprep.subr.mxu0 0.0
        %1567 = vmatpush1.msra.mxu0 0.0
        %1568 = vmatprep.subr.mxu0 0.0
        %1569 = vmatpush1.msra.mxu0 0.0
        %1570 = vmatprep.mubr.f32.mxu0 0.0
        %1571 = vmatmul.mubr.f32.gmra.mrb[0].mxu0 %v1501
        %v1572 = vpop.f32.mrb[0].mxu0
        %v1573 = vadd.f32 %v1493, %v1572
        %v1574 = vpop.f32.mrb[0].mxu0
        %1575 = vmatprep.mubr.f32.mxu0 0.0
        %1576 = vmatmul.mubr.f32.gmra.mrb[0].mxu0 %v1504
        %v1577 = vpop.f32.mrb[0].mxu0
        %v1578 = vadd.f32 %v1498, %v1577
        %v1579 = vpop.f32.mrb[0].mxu0
        %1580 = vdwg.mxu0
        %vm1581 = vcmp.gt.f32.partialorder %v1573, 0.0
        %vm1582 = vcmp.gt.f32.partialorder %v1578, 0.0
        %v1583 = vmin.f32 %v1573, 0.0
        %v1584 = vmin.f32 %v1578, 0.0
        %v1585 = vmul.f32 %v1583, 1.442695
        %v1586 = vpow.pop %v1585
        %v1587 = vmul.f32 %v1584, 1.442695
        %v1588 = vpow.pop %v1587
        %v1589 = vsub.f32 %v1586, 1.0
        %v1590 = vsub.f32 %v1588, 1.0
        %v1591 = vsel %vm1581, %v1573, %v1589
        %v1592 = vsel %vm1582, %v1578, %v1590
        %1595 = vrot.lane.b32.xlu0 %v1591, 8
        %v1596 = vpop.permute.xlu0 %1595
        %1597 = vrot.lane.b32.xlu0 %v1592, 8
        %v1598 = vpop.permute.xlu0 %1597
        %v1601 = vsel %vm1064, 0.0, %v1596
        %v1602 = vsel %vm1064, 0.0, %v1598
        %1603 = vrot.lane.b32.xlu0 %v1591, 4
        %v1604 = vpop.permute.xlu0 %1603
        %1605 = vrot.lane.b32.xlu0 %v1592, 4
        %v1606 = vpop.permute.xlu0 %1605
        %v1609 = vsel %vm1062, 0.0, %v1604
        %v1610 = vsel %vm1062, 0.0, %v1606
        %1611 = vrot.lane.b32.xlu0 %v1591, 124
        %v1612 = vpop.permute.xlu0 %1611
        %1613 = vrot.lane.b32.xlu0 %v1592, 124
        %v1614 = vpop.permute.xlu0 %1613
        %v1617 = vsel %vm1453, %v1612, 0.0
        %v1618 = vsel %vm1453, %v1614, 0.0
        %1619 = vrot.lane.b32.xlu0 %v1591, 120
        %v1620 = vpop.permute.xlu0 %1619
        %1621 = vrot.lane.b32.xlu0 %v1592, 120
        %v1622 = vpop.permute.xlu0 %1621
        %v1625 = vsel %vm1450, %v1620, 0.0
        %v1626 = vsel %vm1450, %v1622, 0.0
        %1628 = vset.pattern.permute.xlu0 0
        %1629 = vperm.xlu0 %1628, %v639
        %v1630 = vpop.permute.xlu0 %1629
        %1633 = vset.pattern.permute.xlu0 0
        %1634 = vperm.xlu0 %1633, %v640
        %v1635 = vpop.permute.xlu0 %1634
        %v1638 = vsel %vm1276, %v637, 0
        %v1641 = vsel %vm1276, %v638, 0
        %1643 = vmatprep.subr.mxu0 0.0
        %1644 = vmatpush1.msra.mxu0 %v1601
        %1645 = vmatprep.subr.mxu0 0.0
        %1646 = vmatpush1.msra.mxu0 %v1602
        %1647 = vmatprep.subr.mxu0 0.0
        %1648 = vmatpush1.msra.mxu0 %v1609
        %1649 = vmatprep.subr.mxu0 0.0
        %1650 = vmatpush1.msra.mxu0 %v1610
        %1651 = vmatprep.subr.mxu0 0.0
        %1652 = vmatpush1.msra.mxu0 %v1591
        %1653 = vmatprep.subr.mxu0 0.0
        %1654 = vmatpush1.msra.mxu0 %v1592
        %1655 = vmatprep.subr.mxu0 0.0
        %1656 = vmatpush1.msra.mxu0 %v1617
        %1657 = vmatprep.subr.mxu0 0.0
        %1658 = vmatpush1.msra.mxu0 %v1618
        %1659 = vmatprep.subr.mxu0 0.0
        %1660 = vmatpush1.msra.mxu0 %v1625
        %1661 = vmatprep.subr.mxu0 0.0
        %1662 = vmatpush1.msra.mxu0 %v1626
        %1663 = vmatprep.subr.mxu0 0.0
        %1664 = vmatpush1.msra.mxu0 0.0
        %1665 = vmatprep.subr.mxu0 0.0
        %1666 = vmatpush1.msra.mxu0 0.0
        %1667 = vmatprep.subr.mxu0 0.0
        %1668 = vmatpush1.msra.mxu0 0.0
        %1669 = vmatprep.subr.mxu0 0.0
        %1670 = vmatpush1.msra.mxu0 0.0
        %1671 = vmatprep.subr.mxu0 0.0
        %1672 = vmatpush1.msra.mxu0 0.0
        %1673 = vmatprep.subr.mxu0 0.0
        %1674 = vmatpush1.msra.mxu0 0.0
        %1675 = vmatprep.subr.mxu0 0.0
        %1676 = vmatpush1.msra.mxu0 0.0
        %1677 = vmatprep.subr.mxu0 0.0
        %1678 = vmatpush1.msra.mxu0 0.0
        %1679 = vmatprep.subr.mxu0 0.0
        %1680 = vmatpush1.msra.mxu0 0.0
        %1681 = vmatprep.subr.mxu0 0.0
        %1682 = vmatpush1.msra.mxu0 0.0
        %1683 = vmatprep.subr.mxu0 0.0
        %1684 = vmatpush1.msra.mxu0 0.0
        %1685 = vmatprep.subr.mxu0 0.0
        %1686 = vmatpush1.msra.mxu0 0.0
        %1687 = vmatprep.subr.mxu0 0.0
        %1688 = vmatpush1.msra.mxu0 0.0
        %1689 = vmatprep.subr.mxu0 0.0
        %1690 = vmatpush1.msra.mxu0 0.0
        %1691 = vmatprep.subr.mxu0 0.0
        %1692 = vmatpush1.msra.mxu0 0.0
        %1693 = vmatprep.subr.mxu0 0.0
        %1694 = vmatpush1.msra.mxu0 0.0
        %1695 = vmatprep.subr.mxu0 0.0
        %1696 = vmatpush1.msra.mxu0 0.0
        %1697 = vmatprep.subr.mxu0 0.0
        %1698 = vmatpush1.msra.mxu0 0.0
        %1699 = vmatprep.subr.mxu0 0.0
        %1700 = vmatpush1.msra.mxu0 0.0
        %1701 = vmatprep.subr.mxu0 0.0
        %1702 = vmatpush1.msra.mxu0 0.0
        %1703 = vmatprep.subr.mxu0 0.0
        %1704 = vmatpush1.msra.mxu0 0.0
        %1705 = vmatprep.subr.mxu0 0.0
        %1706 = vmatpush1.msra.mxu0 0.0
        %1707 = vmatprep.mubr.f32.mxu0 0.0
        %1708 = vmatmul.mubr.f32.gmra.mrb[0].mxu0 %v1638
        %v1709 = vpop.f32.mrb[0].mxu0
        %v1710 = vadd.f32 %v1630, %v1709
        %v1711 = vpop.f32.mrb[0].mxu0
        %1712 = vmatprep.mubr.f32.mxu0 0.0
        %1713 = vmatmul.mubr.f32.gmra.mrb[0].mxu0 %v1641
        %v1714 = vpop.f32.mrb[0].mxu0
        %v1715 = vadd.f32 %v1635, %v1714
        %v1716 = vpop.f32.mrb[0].mxu0
        %1717 = vdwg.mxu0
        %v1718 = vadd.f32 %v1454, %v1710
        %v1719 = vadd.f32 %v1455, %v1715
        %vm1720 = vcmp.gt.f32.partialorder %v1718, 0.0
        %vm1721 = vcmp.gt.f32.partialorder %v1719, 0.0
        %v1722 = vmin.f32 %v1718, 0.0
        %v1723 = vmin.f32 %v1719, 0.0
        %v1724 = vmul.f32 %v1722, 1.442695
        %v1725 = vpow.pop %v1724
        %v1726 = vmul.f32 %v1723, 1.442695
        %v1727 = vpow.pop %v1726
        %v1728 = vsub.f32 %v1725, 1.0
        %v1729 = vsub.f32 %v1727, 1.0
        %v1730 = vsel %vm1720, %v1718, %v1728
        %v1731 = vsel %vm1721, %v1719, %v1729
        %1734 = vrot.lane.b32.xlu0 %v1730, 8
        %v1735 = vpop.permute.xlu0 %1734
        %1736 = vrot.lane.b32.xlu0 %v1731, 8
        %v1737 = vpop.permute.xlu0 %1736
        %v1740 = vsel %vm1064, 0.0, %v1735
        %v1741 = vsel %vm1064, 0.0, %v1737
        %1742 = vrot.lane.b32.xlu0 %v1730, 4
        %v1743 = vpop.permute.xlu0 %1742
        %1744 = vrot.lane.b32.xlu0 %v1731, 4
        %v1745 = vpop.permute.xlu0 %1744
        %v1748 = vsel %vm1062, 0.0, %v1743
        %v1749 = vsel %vm1062, 0.0, %v1745
        %1750 = vrot.lane.b32.xlu0 %v1730, 124
        %v1751 = vpop.permute.xlu0 %1750
        %1752 = vrot.lane.b32.xlu0 %v1731, 124
        %v1753 = vpop.permute.xlu0 %1752
        %v1756 = vsel %vm1453, %v1751, 0.0
        %v1757 = vsel %vm1453, %v1753, 0.0
        %1758 = vrot.lane.b32.xlu0 %v1730, 120
        %v1759 = vpop.permute.xlu0 %1758
        %1760 = vrot.lane.b32.xlu0 %v1731, 120
        %v1761 = vpop.permute.xlu0 %1760
        %v1764 = vsel %vm1450, %v1759, 0.0
        %v1765 = vsel %vm1450, %v1761, 0.0
        %1767 = vset.pattern.permute.xlu0 0
        %1768 = vperm.xlu0 %1767, %v643
        %v1769 = vpop.permute.xlu0 %1768
        %1772 = vset.pattern.permute.xlu0 0
        %1773 = vperm.xlu0 %1772, %v644
        %v1774 = vpop.permute.xlu0 %1773
        %v1777 = vsel %vm1276, %v641, 0
        %v1780 = vsel %vm1276, %v642, 0
        %1782 = vmatprep.subr.mxu0 0.0
        %1783 = vmatpush1.msra.mxu0 %v1740
        %1784 = vmatprep.subr.mxu0 0.0
        %1785 = vmatpush1.msra.mxu0 %v1741
        %1786 = vmatprep.subr.mxu0 0.0
        %1787 = vmatpush1.msra.mxu0 %v1748
        %1788 = vmatprep.subr.mxu0 0.0
        %1789 = vmatpush1.msra.mxu0 %v1749
        %1790 = vmatprep.subr.mxu0 0.0
        %1791 = vmatpush1.msra.mxu0 %v1730
        %1792 = vmatprep.subr.mxu0 0.0
        %1793 = vmatpush1.msra.mxu0 %v1731
        %1794 = vmatprep.subr.mxu0 0.0
        %1795 = vmatpush1.msra.mxu0 %v1756
        %1796 = vmatprep.subr.mxu0 0.0
        %1797 = vmatpush1.msra.mxu0 %v1757
        %1798 = vmatprep.subr.mxu0 0.0
        %1799 = vmatpush1.msra.mxu0 %v1764
        %1800 = vmatprep.subr.mxu0 0.0
        %1801 = vmatpush1.msra.mxu0 %v1765
        %1802 = vmatprep.subr.mxu0 0.0
        %1803 = vmatpush1.msra.mxu0 0.0
        %1804 = vmatprep.subr.mxu0 0.0
        %1805 = vmatpush1.msra.mxu0 0.0
        %1806 = vmatprep.subr.mxu0 0.0
        %1807 = vmatpush1.msra.mxu0 0.0
        %1808 = vmatprep.subr.mxu0 0.0
        %1809 = vmatpush1.msra.mxu0 0.0
        %1810 = vmatprep.subr.mxu0 0.0
        %1811 = vmatpush1.msra.mxu0 0.0
        %1812 = vmatprep.subr.mxu0 0.0
        %1813 = vmatpush1.msra.mxu0 0.0
        %1814 = vmatprep.subr.mxu0 0.0
        %1815 = vmatpush1.msra.mxu0 0.0
        %1816 = vmatprep.subr.mxu0 0.0
        %1817 = vmatpush1.msra.mxu0 0.0
        %1818 = vmatprep.subr.mxu0 0.0
        %1819 = vmatpush1.msra.mxu0 0.0
        %1820 = vmatprep.subr.mxu0 0.0
        %1821 = vmatpush1.msra.mxu0 0.0
        %1822 = vmatprep.subr.mxu0 0.0
        %1823 = vmatpush1.msra.mxu0 0.0
        %1824 = vmatprep.subr.mxu0 0.0
        %1825 = vmatpush1.msra.mxu0 0.0
        %1826 = vmatprep.subr.mxu0 0.0
        %1827 = vmatpush1.msra.mxu0 0.0
        %1828 = vmatprep.subr.mxu0 0.0
        %1829 = vmatpush1.msra.mxu0 0.0
        %1830 = vmatprep.subr.mxu0 0.0
        %1831 = vmatpush1.msra.mxu0 0.0
        %1832 = vmatprep.subr.mxu0 0.0
        %1833 = vmatpush1.msra.mxu0 0.0
        %1834 = vmatprep.subr.mxu0 0.0
        %1835 = vmatpush1.msra.mxu0 0.0
        %1836 = vmatprep.subr.mxu0 0.0
        %1837 = vmatpush1.msra.mxu0 0.0
        %1838 = vmatprep.subr.mxu0 0.0
        %1839 = vmatpush1.msra.mxu0 0.0
        %1840 = vmatprep.subr.mxu0 0.0
        %1841 = vmatpush1.msra.mxu0 0.0
        %1842 = vmatprep.subr.mxu0 0.0
        %1843 = vmatpush1.msra.mxu0 0.0
        %1844 = vmatprep.subr.mxu0 0.0
        %1845 = vmatpush1.msra.mxu0 0.0
        %1846 = vmatprep.mubr.f32.mxu0 0.0
        %1847 = vmatmul.mubr.f32.gmra.mrb[0].mxu0 %v1777
        %v1848 = vpop.f32.mrb[0].mxu0
        %v1849 = vadd.f32 %v1769, %v1848
        %v1850 = vpop.f32.mrb[0].mxu0
        %1851 = vmatprep.mubr.f32.mxu0 0.0
        %1852 = vmatmul.mubr.f32.gmra.mrb[0].mxu0 %v1780
        %v1853 = vpop.f32.mrb[0].mxu0
        %v1854 = vadd.f32 %v1774, %v1853
        %v1855 = vpop.f32.mrb[0].mxu0
        %1856 = vdwg.mxu0
        %vm1857 = vcmp.gt.f32.partialorder %v1849, 0.0
        %vm1858 = vcmp.gt.f32.partialorder %v1854, 0.0
        %v1859 = vmin.f32 %v1849, 0.0
        %v1860 = vmin.f32 %v1854, 0.0
        %v1861 = vmul.f32 %v1859, 1.442695
        %v1862 = vpow.pop %v1861
        %v1863 = vmul.f32 %v1860, 1.442695
        %v1864 = vpow.pop %v1863
        %v1865 = vsub.f32 %v1862, 1.0
        %v1866 = vsub.f32 %v1864, 1.0
        %v1867 = vsel %vm1857, %v1849, %v1865
        %v1868 = vsel %vm1858, %v1854, %v1866
        %1870 = vset.pattern.permute.xlu0 0
        %1871 = vperm.xlu0 %1870, %v646
        %v1872 = vpop.permute.xlu0 %1871
        %v1875 = vsel %vm669, %v645, 0
        %1877 = vmatprep.subr.mxu0 0.0
        %1878 = vmatpush1.msra.mxu0 %v1867
        %1879 = vmatprep.subr.mxu0 0.0
        %1880 = vmatpush1.msra.mxu0 %v1868
        %1881 = vmatprep.subr.mxu0 0.0
        %1882 = vmatpush1.msra.mxu0 0.0
        %1883 = vmatprep.subr.mxu0 0.0
        %1884 = vmatpush1.msra.mxu0 0.0
        %1885 = vmatprep.subr.mxu0 0.0
        %1886 = vmatpush1.msra.mxu0 0.0
        %1887 = vmatprep.subr.mxu0 0.0
        %1888 = vmatpush1.msra.mxu0 0.0
        %1889 = vmatprep.subr.mxu0 0.0
        %1890 = vmatpush1.msra.mxu0 0.0
        %1891 = vmatprep.subr.mxu0 0.0
        %1892 = vmatpush1.msra.mxu0 0.0
        %1893 = vmatprep.subr.mxu0 0.0
        %1894 = vmatpush1.msra.mxu0 0.0
        %1895 = vmatprep.subr.mxu0 0.0
        %1896 = vmatpush1.msra.mxu0 0.0
        %1897 = vmatprep.subr.mxu0 0.0
        %1898 = vmatpush1.msra.mxu0 0.0
        %1899 = vmatprep.subr.mxu0 0.0
        %1900 = vmatpush1.msra.mxu0 0.0
        %1901 = vmatprep.subr.mxu0 0.0
        %1902 = vmatpush1.msra.mxu0 0.0
        %1903 = vmatprep.subr.mxu0 0.0
        %1904 = vmatpush1.msra.mxu0 0.0
        %1905 = vmatprep.subr.mxu0 0.0
        %1906 = vmatpush1.msra.mxu0 0.0
        %1907 = vmatprep.subr.mxu0 0.0
        %1908 = vmatpush1.msra.mxu0 0.0
        %1909 = vmatprep.subr.mxu0 0.0
        %1910 = vmatpush1.msra.mxu0 0.0
        %1911 = vmatprep.subr.mxu0 0.0
        %1912 = vmatpush1.msra.mxu0 0.0
        %1913 = vmatprep.subr.mxu0 0.0
        %1914 = vmatpush1.msra.mxu0 0.0
        %1915 = vmatprep.subr.mxu0 0.0
        %1916 = vmatpush1.msra.mxu0 0.0
        %1917 = vmatprep.subr.mxu0 0.0
        %1918 = vmatpush1.msra.mxu0 0.0
        %1919 = vmatprep.subr.mxu0 0.0
        %1920 = vmatpush1.msra.mxu0 0.0
        %1921 = vmatprep.subr.mxu0 0.0
        %1922 = vmatpush1.msra.mxu0 0.0
        %1923 = vmatprep.subr.mxu0 0.0
        %1924 = vmatpush1.msra.mxu0 0.0
        %1925 = vmatprep.subr.mxu0 0.0
        %1926 = vmatpush1.msra.mxu0 0.0
        %1927 = vmatprep.subr.mxu0 0.0
        %1928 = vmatpush1.msra.mxu0 0.0
        %1929 = vmatprep.subr.mxu0 0.0
        %1930 = vmatpush1.msra.mxu0 0.0
        %1931 = vmatprep.subr.mxu0 0.0
        %1932 = vmatpush1.msra.mxu0 0.0
        %1933 = vmatprep.subr.mxu0 0.0
        %1934 = vmatpush1.msra.mxu0 0.0
        %1935 = vmatprep.subr.mxu0 0.0
        %1936 = vmatpush1.msra.mxu0 0.0
        %1937 = vmatprep.subr.mxu0 0.0
        %1938 = vmatpush1.msra.mxu0 0.0
        %1939 = vmatprep.subr.mxu0 0.0
        %1940 = vmatpush1.msra.mxu0 0.0
        %1941 = vmatprep.mubr.f32.mxu0 0.0
        %1942 = vmatmul.mubr.f32.gmra.mrb[0].mxu0 %v1875
        %v1943 = vpop.f32.mrb[0].mxu0
        %v1944 = vadd.f32 %v1872, %v1943
        %v1945 = vpop.f32.mrb[0].mxu0
        %1946 = vdwg.mxu0
        %vm1947 = vcmask 519168
        %1948 = vst.msk [vmem:[%s595] sm:$0xf] %vm1947, %v1944
        %s1949 = sand.u32 %s445, 1
        %s1950 = scalar_lea.sflag [#allocation3], %s1949
        %s1951 = sand.u32 %s445, 1
        %s1952 = smul.addr %s1951, 4
        %s1953 = scalar_lea.vmem [#allocation2], %s1952
        // Predicated region
        $region97: #{tpu_custom_call.1} parent=95 // pred_check
          %p1954 = pneg %p455
        $region98: #{tpu_custom_call.1} parent=95 // pred_check_branch
          %1956 = sbr.rel (%p1954) target = $region100
        $region99: #{tpu_custom_call.1} parent=95 // pred_region
          %s1958 = ssub.s32 64, 64
          %1959 = vsyncadd %s1950, %s1958
          %s1960 = smul.addr %s33, 64
          %s1961 = scalar_lea.hbm %s19, %s1960
          %s1963 = sshll.u32 %s1953, 4
          %s1964 = int_to_ptr.vmem [resolvable:$true] %s1963
          %1966 = dma.vmem_to_hbm [thread:$0]  %s1964, 64, %s1961, %s1950
        $region100: #{tpu_custom_call.1} parent=95 // pred_fallthru
          _
      $region96: #{tpu_custom_call.1} parent=5 // pred_fallthru
        _
      %p1967 = scmp.le.s32.totalorder 2, %s28
      // Predicated region
      $region101: #{tpu_custom_call.1} parent=5 // pred_check
        %p1968 = pneg %p1967
      $region102: #{tpu_custom_call.1} parent=5 // pred_check_branch
        %1970 = sbr.rel (%p1968) target = $region104
      $region103: #{tpu_custom_call.1} parent=5 // pred_region
        %s1971 = ssub.s32 %s28, 2
        // Predicated region
        $region105: #{tpu_custom_call.1} parent=103 // pred_check
          %p1972 = pneg %p461
        $region106: #{tpu_custom_call.1} parent=103 // pred_check_branch
          %1974 = sbr.rel (%p1972) target = $region108
        $region107: #{tpu_custom_call.1} parent=103 // pred_region
          %s1975 = sand.u32 %s446, 1
          %s1976 = scalar_lea.sflag [#allocation3], %s1975
          %s1977 = sand.u32 %s446, 1
          %s1978 = smul.addr %s1977, 4
          %s1979 = scalar_lea.vmem [#allocation2], %s1978
          %1980 = dma.done %s1976, 64
        $region108: #{tpu_custom_call.1} parent=103 // pred_fallthru
          _
      $region104: #{tpu_custom_call.1} parent=5 // pred_fallthru
        _
    $region6: #{tpu_custom_call.1} parent=1 // loop_footer
      %s32 = sadd.s32 1, %s28
    $region7: #{tpu_custom_call.1} parent=1 // loop_footer_branch
      %27 = sbr.rel target = $region3
    $region8: #{tpu_custom_call.1} parent=1 // loop_exit
      _
    %1981 = vsyncpa [#allocation3], 1
    %s1982 = scalar_lea.sflag [#allocation3], 1
    %1983 = vsyncpa %s1982, 1

</llo_original>
